<compile_context>
chip_gen: v6e
topology: v6e:2x2x1
jax: 0.10.0
libtpu: 0.0.40
codegen_flags: <defaults>
</compile_context>

<pallas_src>
import functools

import jax
import jax.numpy as jnp
from jax.experimental import pallas as pl
from jax.experimental.pallas import tpu as pltpu


def _round_up(n, m):
    return ((n + m - 1) // m) * m


def _lstm_mlp_kernel(x_ref,                       # (S*Bp, Ip)  bf16, time-major
                     wih1_ref, b1_ref,            # (Ip, G) bf16, (1, G) f32
                     wbig_ref, b2_ref,            # (2G, 2G) bf16, (1, G) f32
                     fc1w_ref, fc1b_ref,          # (G, G) bf16, (1, G) f32
                     fc2w_ref, fc2b_ref,          # (G, H2p) bf16, (1, H2p) f32
                     fc3w_ref, fc3b_ref,          # (H2p, Op) bf16, (1, Op) f32
                     out_ref):                    # (Bp, Op) f32
    f32 = jnp.float32
    Bp = out_ref.shape[0]
    G = b1_ref.shape[1]            # packed gate width == 4*H == 128
    H = G // 4
    S = x_ref.shape[0] // Bp

    wbig = wbig_ref[...]           # fused recurrent weights [[Whh1,Wih2],[0,Whh2]]

    # Hoisted layer-1 input projection (+ folded bias): one lane-dense MXU
    # pass over all S timesteps, removed from the serial recurrence.
    xw1 = jnp.dot(x_ref[...], wih1_ref[...],
                  preferred_element_type=f32) + b1_ref[...]      # (S*Bp, G)

    # Per-lane activation constants for the packed-gate layout: tanh band is
    # lanes [2H, 3H); sigmoid(x) = 0.5 + 0.5*tanh(0.5*x) elsewhere, so ONE
    # EUP tanh pass activates all four gates.
    lane = jax.lax.broadcasted_iota(jnp.int32, (Bp, G), 1)
    is_g = jnp.logical_and(lane >= 2 * H, lane < 3 * H)
    sc = jnp.where(is_g, 1.0, 0.5).astype(f32)
    off = jnp.where(is_g, 0.0, 0.5).astype(f32)
    # Pre-broadcast layer-2 bias once (JAX does not CSE broadcast_in_dim).
    b2b = jnp.broadcast_to(b2_ref[...], (Bp, G))

    def gate(g, c):
        act = sc * jnp.tanh(g * sc) + off          # packed i|f|g|o activations
        i_a = act                                   # i band already at [0, H)
        f_a = pltpu.roll(act, shift=3 * H, axis=1)  # f band -> lanes [0, H)
        g_a = pltpu.roll(act, shift=2 * H, axis=1)  # g band -> lanes [0, H)
        o_a = pltpu.roll(act, shift=1 * H, axis=1)  # o band -> lanes [0, H)
        c_new = f_a * c + i_a * g_a                 # lanes >= H hold bounded
        h_new = o_a * jnp.tanh(c_new)               # garbage, killed later by
        return h_new, c_new                         # zero-padded weight rows

    def wave_matmul(h1, h2):
        hcat = jnp.concatenate([h1, h2], axis=1).astype(wbig.dtype)
        return jnp.dot(hcat, wbig, preferred_element_type=f32)   # (Bp, 2G)

    zeros = jnp.zeros((Bp, G), f32)
    # Wavefront schedule: iteration u computes layer-1 step u and layer-2
    # step u-1 off one fused matmul; layer 2's final step drains after the
    # loop.  Fully unrolled (S is a compile-time constant).
    h1, c1 = gate(xw1[0:Bp, :], zeros)              # layer-1 step 0 (h1(-1)=0)
    h2, c2 = zeros, zeros
    for u in range(1, S):
        mm = wave_matmul(h1, h2)                    # uses h1(u-1), h2(u-2)
        n_h1, n_c1 = gate(xw1[u * Bp:(u + 1) * Bp, :] + mm[:, :G], c1)
        h2, c2 = gate(b2b + mm[:, G:], c2)          # layer-2 step u-1
        h1, c1 = n_h1, n_c1
    mm = wave_matmul(h1, h2)
    h2, c2 = gate(b2b + mm[:, G:], c2)              # layer-2 step S-1 (drain)

    # MLP head; dropout layers are identity in eval mode.  Zero-padded weight
    # rows/cols keep every padded lane of y exactly zero.
    y = jnp.tanh(jnp.dot(h2.astype(fc1w_ref.dtype), fc1w_ref[...],
                         preferred_element_type=f32) + fc1b_ref[...])
    y = jnp.tanh(jnp.dot(y.astype(fc2w_ref.dtype), fc2w_ref[...],
                         preferred_element_type=f32) + fc2b_ref[...])
    out = jnp.dot(y.astype(fc3w_ref.dtype), fc3w_ref[...],
                  preferred_element_type=f32) + fc3b_ref[...]
    out_ref[...] = out.astype(out_ref.dtype)


def _pad2(w, rows, cols):
    return jnp.pad(w, ((0, rows - w.shape[0]), (0, cols - w.shape[1])))


def prepare_params(p):
    """One-time weight re-layout, hoisted out of the per-call path."""
    H = p["w_hh_l0"].shape[1]
    G = 4 * H
    assert G == 128, "packed-gate layout requires hidden_layer_size == 32"
    I = p["w_ih_l0"].shape[1]
    H2 = p["fc2_w"].shape[0]
    O = p["fc3_w"].shape[0]
    Ip = _round_up(I, 128)
    H2p = _round_up(H2, 128)
    Op = _round_up(O, 128)
    bf16 = jnp.bfloat16
    f32 = jnp.float32

    # PyTorch stores LSTM weights as (4H, in); transpose -> (in, 4H=G).
    # Rows >= H stay zero so garbage in h/c pad lanes never reaches a matmul.
    whh1 = _pad2(p["w_hh_l0"].T, G, G)
    wih2 = _pad2(p["w_ih_l1"].T, G, G)
    whh2 = _pad2(p["w_hh_l1"].T, G, G)
    wbig = jnp.concatenate(
        [jnp.concatenate([whh1, wih2], axis=1),
         jnp.concatenate([jnp.zeros((G, G), f32), whh2], axis=1)],
        axis=0).astype(bf16)                        # (2G, 2G)

    return {
        "wih1": _pad2(p["w_ih_l0"].T, Ip, G).astype(bf16),
        "b1": (p["b_ih_l0"] + p["b_hh_l0"]).reshape(1, G).astype(f32),
        "wbig": wbig,
        "b2": (p["b_ih_l1"] + p["b_hh_l1"]).reshape(1, G).astype(f32),
        "fc1w": _pad2(p["fc1_w"].T, G, G).astype(bf16),
        "fc1b": _pad2(p["fc1_b"].reshape(1, -1), 1, G).astype(f32),
        "fc2w": _pad2(p["fc2_w"].T, G, H2p).astype(bf16),
        "fc2b": _pad2(p["fc2_b"].reshape(1, -1), 1, H2p).astype(f32),
        "fc3w": _pad2(p["fc3_w"].T, H2p, Op).astype(bf16),
        "fc3b": _pad2(p["fc3_b"].reshape(1, -1), 1, Op).astype(f32),
    }


@functools.partial(jax.jit, static_argnames=("output_size",))
def lstm_model_forward(x, pp, *, output_size):
    """x: (B, S, I) batch_first f32; pp: prepare_params(...) output."""
    B, S, I = x.shape
    Bp = _round_up(B, 8)                            # f32 sublane multiple
    Ip = pp["wih1"].shape[0]
    Op = pp["fc3w"].shape[1]

    # Time-major, batch- and feature-padded, flattened, bf16 MXU operand.
    x_tm = jnp.pad(jnp.swapaxes(x, 0, 1), ((0, 0), (0, Bp - B), (0, Ip - I)))
    x_flat = x_tm.reshape(S * Bp, Ip).astype(jnp.bfloat16)

    args = (x_flat, pp["wih1"], pp["b1"], pp["wbig"], pp["b2"],
            pp["fc1w"], pp["fc1b"], pp["fc2w"], pp["fc2b"],
            pp["fc3w"], pp["fc3b"])
    vmem = pl.BlockSpec(memory_space=pltpu.MemorySpace.VMEM)
    out_p = pl.pallas_call(
        _lstm_mlp_kernel,
        out_shape=jax.ShapeDtypeStruct((Bp, Op), jnp.float32),
        in_specs=[vmem] * len(args),
        out_specs=vmem,
    )(*args)
    return out_p[:B, :output_size]


def init_params(key, input_size, hidden, output_size):
    """Deterministic synthetic parameters (PyTorch-style uniform init)."""
    keys = jax.random.split(key, 16)
    bound = 1.0 / jnp.sqrt(hidden)

    def u(k, shape):
        return jax.random.uniform(k, shape, jnp.float32, -bound, bound)

    return {
        # LSTM layer 0
        "w_ih_l0": u(keys[0], (4 * hidden, input_size)),
        "w_hh_l0": u(keys[1], (4 * hidden, hidden)),
        "b_ih_l0": u(keys[2], (4 * hidden,)),
        "b_hh_l0": u(keys[3], (4 * hidden,)),
        # LSTM layer 1
        "w_ih_l1": u(keys[4], (4 * hidden, hidden)),
        "w_hh_l1": u(keys[5], (4 * hidden, hidden)),
        "b_ih_l1": u(keys[6], (4 * hidden,)),
        "b_hh_l1": u(keys[7], (4 * hidden,)),
        # MLP head
        "fc1_w": u(keys[8], (hidden, hidden)),
        "fc1_b": u(keys[9], (hidden,)),
        "fc2_w": u(keys[10], (hidden // 2, hidden)),
        "fc2_b": u(keys[11], (hidden // 2,)),
        "fc3_w": u(keys[12], (output_size, hidden // 2)),
        "fc3_b": u(keys[13], (output_size,)),
    }


def reference_forward(x, p):
    """Pure-JAX f32 reference matching PyTorch eval-mode semantics."""
    B, S, I = x.shape
    H = p["w_hh_l0"].shape[1]

    def cell(x_t, h, c, wih, whh, bih, bhh):
        g = x_t @ wih.T + bih + h @ whh.T + bhh
        i = jax.nn.sigmoid(g[:, 0 * H:1 * H])
        f = jax.nn.sigmoid(g[:, 1 * H:2 * H])
        gg = jnp.tanh(g[:, 2 * H:3 * H])
        o = jax.nn.sigmoid(g[:, 3 * H:4 * H])
        c = f * c + i * gg
        h = o * jnp.tanh(c)
        return h, c

    h1 = c1 = h2 = c2 = jnp.zeros((B, H), jnp.float32)
    for t in range(S):
        h1, c1 = cell(x[:, t, :], h1, c1, p["w_ih_l0"], p["w_hh_l0"],
                      p["b_ih_l0"], p["b_hh_l0"])
        h2, c2 = cell(h1, h2, c2, p["w_ih_l1"], p["w_hh_l1"],
                      p["b_ih_l1"], p["b_hh_l1"])
    y = jnp.tanh(h2 @ p["fc1_w"].T + p["fc1_b"])
    y = jnp.tanh(y @ p["fc2_w"].T + p["fc2_b"])
    return y @ p["fc3_w"].T + p["fc3_b"]


if __name__ == "__main__":
    B, S, I, H, O = 2, 8, 16, 32, 4

    key = jax.random.PRNGKey(0)
    k_x, k_p = jax.random.split(key)
    x = jax.random.normal(k_x, (B, S, I), jnp.float32)
    params = init_params(k_p, I, H, O)

    pp = prepare_params(params)                     # one-time weight re-layout
    out = jax.block_until_ready(lstm_model_forward(x, pp, output_size=O))
    ref = jax.block_until_ready(reference_forward(x, params))

    assert out.shape == (B, O), out.shape
    # bf16 MXU operands (f32 accumulation) -> tolerance loosened vs f32 ref.
    assert jnp.allclose(out, ref, atol=2e-2, rtol=2e-2), (out, ref)
    print("KERNEL_OK")
</pallas_src>

<mosaic_0001>
module attributes {stable_mosaic.version = 11 : i64} {
  func.func @_lstm_mlp_kernel(%arg0: memref<64x128xbf16, #tpu.memory_space<vmem>>, %arg1: memref<128x128xbf16, #tpu.memory_space<vmem>>, %arg2: memref<1x128xf32, #tpu.memory_space<vmem>>, %arg3: memref<256x256xbf16, #tpu.memory_space<vmem>>, %arg4: memref<1x128xf32, #tpu.memory_space<vmem>>, %arg5: memref<128x128xbf16, #tpu.memory_space<vmem>>, %arg6: memref<1x128xf32, #tpu.memory_space<vmem>>, %arg7: memref<128x128xbf16, #tpu.memory_space<vmem>>, %arg8: memref<1x128xf32, #tpu.memory_space<vmem>>, %arg9: memref<128x128xbf16, #tpu.memory_space<vmem>>, %arg10: memref<1x128xf32, #tpu.memory_space<vmem>>, %arg11: memref<8x128xf32, #tpu.memory_space<vmem>>) attributes {dimension_semantics = [], scalar_prefetch = 0 : i64, scratch_operands = 0 : i64, tpu.core_type = #tpu.core_type<tc>} {
    %c0 = arith.constant 0 : index
    %c0_0 = arith.constant 0 : index
    %0 = vector.load %arg3[%c0, %c0_0] : memref<256x256xbf16, #tpu.memory_space<vmem>>, vector<256x256xbf16>
    %c0_1 = arith.constant 0 : index
    %c0_2 = arith.constant 0 : index
    %1 = vector.load %arg0[%c0_1, %c0_2] : memref<64x128xbf16, #tpu.memory_space<vmem>>, vector<64x128xbf16>
    %c0_3 = arith.constant 0 : index
    %c0_4 = arith.constant 0 : index
    %2 = vector.load %arg1[%c0_3, %c0_4] : memref<128x128xbf16, #tpu.memory_space<vmem>>, vector<128x128xbf16>
    %cst = arith.constant dense<0.000000e+00> : vector<64x128xf32>
    %3 = tpu.matmul %1, %2, %cst {dimension_numbers = #tpu.dot_dimension_numbers<[1], [0], [0], [1], [0, 0, 1, 1], [], []>} : vector<64x128xbf16>, vector<128x128xbf16>, vector<64x128xf32> -> vector<64x128xf32>
    %c0_5 = arith.constant 0 : index
    %c0_6 = arith.constant 0 : index
    %4 = vector.load %arg2[%c0_5, %c0_6] : memref<1x128xf32, #tpu.memory_space<vmem>>, vector<1x128xf32>
    %5 = vector.broadcast %4 : vector<1x128xf32> to vector<64x128xf32>
    %6 = arith.addf %3, %5 : vector<64x128xf32>
    %7 = tpu.iota {dimensions = array<i32: 1>} : vector<8x128xi32>
    %c64_i32 = arith.constant 64 : i32
    %8 = vector.broadcast %c64_i32 : i32 to vector<8x128xi32>
    %9 = arith.cmpi sge, %7, %8 : vector<8x128xi32>
    %c96_i32 = arith.constant 96 : i32
    %10 = vector.broadcast %c96_i32 : i32 to vector<8x128xi32>
    %11 = arith.cmpi slt, %7, %10 : vector<8x128xi32>
    %12 = arith.andi %9, %11 : vector<8x128xi1>
    %cst_7 = arith.constant 1.000000e+00 : f32
    %cst_8 = arith.constant 5.000000e-01 : f32
    %13 = vector.broadcast %cst_7 : f32 to vector<8x128xf32>
    %14 = vector.broadcast %cst_8 : f32 to vector<8x128xf32>
    %15 = arith.select %12, %13, %14 : vector<8x128xi1>, vector<8x128xf32>
    %cst_9 = arith.constant 0.000000e+00 : f32
    %cst_10 = arith.constant 5.000000e-01 : f32
    %16 = vector.broadcast %cst_9 : f32 to vector<8x128xf32>
    %17 = vector.broadcast %cst_10 : f32 to vector<8x128xf32>
    %18 = arith.select %12, %16, %17 : vector<8x128xi1>, vector<8x128xf32>
    %c0_11 = arith.constant 0 : index
    %c0_12 = arith.constant 0 : index
    %19 = vector.load %arg4[%c0_11, %c0_12] : memref<1x128xf32, #tpu.memory_space<vmem>>, vector<1x128xf32>
    %20 = vector.shape_cast %19 : vector<1x128xf32> to vector<1x128xf32>
    %21 = vector.broadcast %20 : vector<1x128xf32> to vector<8x128xf32>
    %cst_13 = arith.constant 0.000000e+00 : f32
    %22 = vector.broadcast %cst_13 : f32 to vector<8x128xf32>
    %23 = vector.extract_strided_slice %6 {offsets = [0, 0], sizes = [8, 128], strides = [1, 1]} : vector<64x128xf32> to vector<8x128xf32>
    %24 = arith.mulf %23, %15 : vector<8x128xf32>
    %25 = math.tanh %24 : vector<8x128xf32>
    %26 = arith.mulf %15, %25 : vector<8x128xf32>
    %27 = arith.addf %26, %18 : vector<8x128xf32>
    %c96_i32_14 = arith.constant 96 : i32
    %28 = tpu.dynamic_rotate %27 by %c96_i32_14 dim 1 : vector<8x128xf32>, i32 -> vector<8x128xf32>
    %c64_i32_15 = arith.constant 64 : i32
    %29 = tpu.dynamic_rotate %27 by %c64_i32_15 dim 1 : vector<8x128xf32>, i32 -> vector<8x128xf32>
    %c32_i32 = arith.constant 32 : i32
    %30 = tpu.dynamic_rotate %27 by %c32_i32 dim 1 : vector<8x128xf32>, i32 -> vector<8x128xf32>
    %31 = arith.mulf %28, %22 : vector<8x128xf32>
    %32 = arith.mulf %27, %29 : vector<8x128xf32>
    %33 = arith.addf %31, %32 : vector<8x128xf32>
    %34 = math.tanh %33 : vector<8x128xf32>
    %35 = arith.mulf %30, %34 : vector<8x128xf32>
    %36 = tpu.concatenate %35, %22 in 1 : vector<8x128xf32>, vector<8x128xf32> -> vector<8x256xf32>
    %37 = arith.truncf %36 : vector<8x256xf32> to vector<8x256xbf16>
    %cst_16 = arith.constant dense<0.000000e+00> : vector<8x256xf32>
    %38 = tpu.matmul %37, %0, %cst_16 {dimension_numbers = #tpu.dot_dimension_numbers<[1], [0], [0], [1], [0, 0, 1, 1], [], []>} : vector<8x256xbf16>, vector<256x256xbf16>, vector<8x256xf32> -> vector<8x256xf32>
    %39 = vector.extract_strided_slice %6 {offsets = [8, 0], sizes = [8, 128], strides = [1, 1]} : vector<64x128xf32> to vector<8x128xf32>
    %40 = vector.extract_strided_slice %38 {offsets = [0, 0], sizes = [8, 128], strides = [1, 1]} : vector<8x256xf32> to vector<8x128xf32>
    %41 = arith.addf %39, %40 : vector<8x128xf32>
    %42 = arith.mulf %41, %15 : vector<8x128xf32>
    %43 = math.tanh %42 : vector<8x128xf32>
    %44 = arith.mulf %15, %43 : vector<8x128xf32>
    %45 = arith.addf %44, %18 : vector<8x128xf32>
    %c96_i32_17 = arith.constant 96 : i32
    %46 = tpu.dynamic_rotate %45 by %c96_i32_17 dim 1 : vector<8x128xf32>, i32 -> vector<8x128xf32>
    %c64_i32_18 = arith.constant 64 : i32
    %47 = tpu.dynamic_rotate %45 by %c64_i32_18 dim 1 : vector<8x128xf32>, i32 -> vector<8x128xf32>
    %c32_i32_19 = arith.constant 32 : i32
    %48 = tpu.dynamic_rotate %45 by %c32_i32_19 dim 1 : vector<8x128xf32>, i32 -> vector<8x128xf32>
    %49 = arith.mulf %46, %33 : vector<8x128xf32>
    %50 = arith.mulf %45, %47 : vector<8x128xf32>
    %51 = arith.addf %49, %50 : vector<8x128xf32>
    %52 = math.tanh %51 : vector<8x128xf32>
    %53 = arith.mulf %48, %52 : vector<8x128xf32>
    %54 = vector.extract_strided_slice %38 {offsets = [0, 128], sizes = [8, 128], strides = [1, 1]} : vector<8x256xf32> to vector<8x128xf32>
    %55 = arith.addf %21, %54 : vector<8x128xf32>
    %56 = arith.mulf %55, %15 : vector<8x128xf32>
    %57 = math.tanh %56 : vector<8x128xf32>
    %58 = arith.mulf %15, %57 : vector<8x128xf32>
    %59 = arith.addf %58, %18 : vector<8x128xf32>
    %c96_i32_20 = arith.constant 96 : i32
    %60 = tpu.dynamic_rotate %59 by %c96_i32_20 dim 1 : vector<8x128xf32>, i32 -> vector<8x128xf32>
    %c64_i32_21 = arith.constant 64 : i32
    %61 = tpu.dynamic_rotate %59 by %c64_i32_21 dim 1 : vector<8x128xf32>, i32 -> vector<8x128xf32>
    %c32_i32_22 = arith.constant 32 : i32
    %62 = tpu.dynamic_rotate %59 by %c32_i32_22 dim 1 : vector<8x128xf32>, i32 -> vector<8x128xf32>
    %63 = arith.mulf %60, %22 : vector<8x128xf32>
    %64 = arith.mulf %59, %61 : vector<8x128xf32>
    %65 = arith.addf %63, %64 : vector<8x128xf32>
    %66 = math.tanh %65 : vector<8x128xf32>
    %67 = arith.mulf %62, %66 : vector<8x128xf32>
    %68 = tpu.concatenate %53, %67 in 1 : vector<8x128xf32>, vector<8x128xf32> -> vector<8x256xf32>
    %69 = arith.truncf %68 : vector<8x256xf32> to vector<8x256xbf16>
    %cst_23 = arith.constant dense<0.000000e+00> : vector<8x256xf32>
    %70 = tpu.matmul %69, %0, %cst_23 {dimension_numbers = #tpu.dot_dimension_numbers<[1], [0], [0], [1], [0, 0, 1, 1], [], []>} : vector<8x256xbf16>, vector<256x256xbf16>, vector<8x256xf32> -> vector<8x256xf32>
    %71 = vector.extract_strided_slice %6 {offsets = [16, 0], sizes = [8, 128], strides = [1, 1]} : vector<64x128xf32> to vector<8x128xf32>
    %72 = vector.extract_strided_slice %70 {offsets = [0, 0], sizes = [8, 128], strides = [1, 1]} : vector<8x256xf32> to vector<8x128xf32>
    %73 = arith.addf %71, %72 : vector<8x128xf32>
    %74 = arith.mulf %73, %15 : vector<8x128xf32>
    %75 = math.tanh %74 : vector<8x128xf32>
    %76 = arith.mulf %15, %75 : vector<8x128xf32>
    %77 = arith.addf %76, %18 : vector<8x128xf32>
    %c96_i32_24 = arith.constant 96 : i32
    %78 = tpu.dynamic_rotate %77 by %c96_i32_24 dim 1 : vector<8x128xf32>, i32 -> vector<8x128xf32>
    %c64_i32_25 = arith.constant 64 : i32
    %79 = tpu.dynamic_rotate %77 by %c64_i32_25 dim 1 : vector<8x128xf32>, i32 -> vector<8x128xf32>
    %c32_i32_26 = arith.constant 32 : i32
    %80 = tpu.dynamic_rotate %77 by %c32_i32_26 dim 1 : vector<8x128xf32>, i32 -> vector<8x128xf32>
    %81 = arith.mulf %78, %51 : vector<8x128xf32>
    %82 = arith.mulf %77, %79 : vector<8x128xf32>
    %83 = arith.addf %81, %82 : vector<8x128xf32>
    %84 = math.tanh %83 : vector<8x128xf32>
    %85 = arith.mulf %80, %84 : vector<8x128xf32>
    %86 = vector.extract_strided_slice %70 {offsets = [0, 128], sizes = [8, 128], strides = [1, 1]} : vector<8x256xf32> to vector<8x128xf32>
    %87 = arith.addf %21, %86 : vector<8x128xf32>
    %88 = arith.mulf %87, %15 : vector<8x128xf32>
    %89 = math.tanh %88 : vector<8x128xf32>
    %90 = arith.mulf %15, %89 : vector<8x128xf32>
    %91 = arith.addf %90, %18 : vector<8x128xf32>
    %c96_i32_27 = arith.constant 96 : i32
    %92 = tpu.dynamic_rotate %91 by %c96_i32_27 dim 1 : vector<8x128xf32>, i32 -> vector<8x128xf32>
    %c64_i32_28 = arith.constant 64 : i32
    %93 = tpu.dynamic_rotate %91 by %c64_i32_28 dim 1 : vector<8x128xf32>, i32 -> vector<8x128xf32>
    %c32_i32_29 = arith.constant 32 : i32
    %94 = tpu.dynamic_rotate %91 by %c32_i32_29 dim 1 : vector<8x128xf32>, i32 -> vector<8x128xf32>
    %95 = arith.mulf %92, %65 : vector<8x128xf32>
    %96 = arith.mulf %91, %93 : vector<8x128xf32>
    %97 = arith.addf %95, %96 : vector<8x128xf32>
    %98 = math.tanh %97 : vector<8x128xf32>
    %99 = arith.mulf %94, %98 : vector<8x128xf32>
    %100 = tpu.concatenate %85, %99 in 1 : vector<8x128xf32>, vector<8x128xf32> -> vector<8x256xf32>
    %101 = arith.truncf %100 : vector<8x256xf32> to vector<8x256xbf16>
    %cst_30 = arith.constant dense<0.000000e+00> : vector<8x256xf32>
    %102 = tpu.matmul %101, %0, %cst_30 {dimension_numbers = #tpu.dot_dimension_numbers<[1], [0], [0], [1], [0, 0, 1, 1], [], []>} : vector<8x256xbf16>, vector<256x256xbf16>, vector<8x256xf32> -> vector<8x256xf32>
    %103 = vector.extract_strided_slice %6 {offsets = [24, 0], sizes = [8, 128], strides = [1, 1]} : vector<64x128xf32> to vector<8x128xf32>
    %104 = vector.extract_strided_slice %102 {offsets = [0, 0], sizes = [8, 128], strides = [1, 1]} : vector<8x256xf32> to vector<8x128xf32>
    %105 = arith.addf %103, %104 : vector<8x128xf32>
    %106 = arith.mulf %105, %15 : vector<8x128xf32>
    %107 = math.tanh %106 : vector<8x128xf32>
    %108 = arith.mulf %15, %107 : vector<8x128xf32>
    %109 = arith.addf %108, %18 : vector<8x128xf32>
    %c96_i32_31 = arith.constant 96 : i32
    %110 = tpu.dynamic_rotate %109 by %c96_i32_31 dim 1 : vector<8x128xf32>, i32 -> vector<8x128xf32>
    %c64_i32_32 = arith.constant 64 : i32
    %111 = tpu.dynamic_rotate %109 by %c64_i32_32 dim 1 : vector<8x128xf32>, i32 -> vector<8x128xf32>
    %c32_i32_33 = arith.constant 32 : i32
    %112 = tpu.dynamic_rotate %109 by %c32_i32_33 dim 1 : vector<8x128xf32>, i32 -> vector<8x128xf32>
    %113 = arith.mulf %110, %83 : vector<8x128xf32>
    %114 = arith.mulf %109, %111 : vector<8x128xf32>
    %115 = arith.addf %113, %114 : vector<8x128xf32>
    %116 = math.tanh %115 : vector<8x128xf32>
    %117 = arith.mulf %112, %116 : vector<8x128xf32>
    %118 = vector.extract_strided_slice %102 {offsets = [0, 128], sizes = [8, 128], strides = [1, 1]} : vector<8x256xf32> to vector<8x128xf32>
    %119 = arith.addf %21, %118 : vector<8x128xf32>
    %120 = arith.mulf %119, %15 : vector<8x128xf32>
    %121 = math.tanh %120 : vector<8x128xf32>
    %122 = arith.mulf %15, %121 : vector<8x128xf32>
    %123 = arith.addf %122, %18 : vector<8x128xf32>
    %c96_i32_34 = arith.constant 96 : i32
    %124 = tpu.dynamic_rotate %123 by %c96_i32_34 dim 1 : vector<8x128xf32>, i32 -> vector<8x128xf32>
    %c64_i32_35 = arith.constant 64 : i32
    %125 = tpu.dynamic_rotate %123 by %c64_i32_35 dim 1 : vector<8x128xf32>, i32 -> vector<8x128xf32>
    %c32_i32_36 = arith.constant 32 : i32
    %126 = tpu.dynamic_rotate %123 by %c32_i32_36 dim 1 : vector<8x128xf32>, i32 -> vector<8x128xf32>
    %127 = arith.mulf %124, %97 : vector<8x128xf32>
    %128 = arith.mulf %123, %125 : vector<8x128xf32>
    %129 = arith.addf %127, %128 : vector<8x128xf32>
    %130 = math.tanh %129 : vector<8x128xf32>
    %131 = arith.mulf %126, %130 : vector<8x128xf32>
    %132 = tpu.concatenate %117, %131 in 1 : vector<8x128xf32>, vector<8x128xf32> -> vector<8x256xf32>
    %133 = arith.truncf %132 : vector<8x256xf32> to vector<8x256xbf16>
    %cst_37 = arith.constant dense<0.000000e+00> : vector<8x256xf32>
    %134 = tpu.matmul %133, %0, %cst_37 {dimension_numbers = #tpu.dot_dimension_numbers<[1], [0], [0], [1], [0, 0, 1, 1], [], []>} : vector<8x256xbf16>, vector<256x256xbf16>, vector<8x256xf32> -> vector<8x256xf32>
    %135 = vector.extract_strided_slice %6 {offsets = [32, 0], sizes = [8, 128], strides = [1, 1]} : vector<64x128xf32> to vector<8x128xf32>
    %136 = vector.extract_strided_slice %134 {offsets = [0, 0], sizes = [8, 128], strides = [1, 1]} : vector<8x256xf32> to vector<8x128xf32>
    %137 = arith.addf %135, %136 : vector<8x128xf32>
    %138 = arith.mulf %137, %15 : vector<8x128xf32>
    %139 = math.tanh %138 : vector<8x128xf32>
    %140 = arith.mulf %15, %139 : vector<8x128xf32>
    %141 = arith.addf %140, %18 : vector<8x128xf32>
    %c96_i32_38 = arith.constant 96 : i32
    %142 = tpu.dynamic_rotate %141 by %c96_i32_38 dim 1 : vector<8x128xf32>, i32 -> vector<8x128xf32>
    %c64_i32_39 = arith.constant 64 : i32
    %143 = tpu.dynamic_rotate %141 by %c64_i32_39 dim 1 : vector<8x128xf32>, i32 -> vector<8x128xf32>
    %c32_i32_40 = arith.constant 32 : i32
    %144 = tpu.dynamic_rotate %141 by %c32_i32_40 dim 1 : vector<8x128xf32>, i32 -> vector<8x128xf32>
    %145 = arith.mulf %142, %115 : vector<8x128xf32>
    %146 = arith.mulf %141, %143 : vector<8x128xf32>
    %147 = arith.addf %145, %146 : vector<8x128xf32>
    %148 = math.tanh %147 : vector<8x128xf32>
    %149 = arith.mulf %144, %148 : vector<8x128xf32>
    %150 = vector.extract_strided_slice %134 {offsets = [0, 128], sizes = [8, 128], strides = [1, 1]} : vector<8x256xf32> to vector<8x128xf32>
    %151 = arith.addf %21, %150 : vector<8x128xf32>
    %152 = arith.mulf %151, %15 : vector<8x128xf32>
    %153 = math.tanh %152 : vector<8x128xf32>
    %154 = arith.mulf %15, %153 : vector<8x128xf32>
    %155 = arith.addf %154, %18 : vector<8x128xf32>
    %c96_i32_41 = arith.constant 96 : i32
    %156 = tpu.dynamic_rotate %155 by %c96_i32_41 dim 1 : vector<8x128xf32>, i32 -> vector<8x128xf32>
    %c64_i32_42 = arith.constant 64 : i32
    %157 = tpu.dynamic_rotate %155 by %c64_i32_42 dim 1 : vector<8x128xf32>, i32 -> vector<8x128xf32>
    %c32_i32_43 = arith.constant 32 : i32
    %158 = tpu.dynamic_rotate %155 by %c32_i32_43 dim 1 : vector<8x128xf32>, i32 -> vector<8x128xf32>
    %159 = arith.mulf %156, %129 : vector<8x128xf32>
    %160 = arith.mulf %155, %157 : vector<8x128xf32>
    %161 = arith.addf %159, %160 : vector<8x128xf32>
    %162 = math.tanh %161 : vector<8x128xf32>
    %163 = arith.mulf %158, %162 : vector<8x128xf32>
    %164 = tpu.concatenate %149, %163 in 1 : vector<8x128xf32>, vector<8x128xf32> -> vector<8x256xf32>
    %165 = arith.truncf %164 : vector<8x256xf32> to vector<8x256xbf16>
    %cst_44 = arith.constant dense<0.000000e+00> : vector<8x256xf32>
    %166 = tpu.matmul %165, %0, %cst_44 {dimension_numbers = #tpu.dot_dimension_numbers<[1], [0], [0], [1], [0, 0, 1, 1], [], []>} : vector<8x256xbf16>, vector<256x256xbf16>, vector<8x256xf32> -> vector<8x256xf32>
    %167 = vector.extract_strided_slice %6 {offsets = [40, 0], sizes = [8, 128], strides = [1, 1]} : vector<64x128xf32> to vector<8x128xf32>
    %168 = vector.extract_strided_slice %166 {offsets = [0, 0], sizes = [8, 128], strides = [1, 1]} : vector<8x256xf32> to vector<8x128xf32>
    %169 = arith.addf %167, %168 : vector<8x128xf32>
    %170 = arith.mulf %169, %15 : vector<8x128xf32>
    %171 = math.tanh %170 : vector<8x128xf32>
    %172 = arith.mulf %15, %171 : vector<8x128xf32>
    %173 = arith.addf %172, %18 : vector<8x128xf32>
    %c96_i32_45 = arith.constant 96 : i32
    %174 = tpu.dynamic_rotate %173 by %c96_i32_45 dim 1 : vector<8x128xf32>, i32 -> vector<8x128xf32>
    %c64_i32_46 = arith.constant 64 : i32
    %175 = tpu.dynamic_rotate %173 by %c64_i32_46 dim 1 : vector<8x128xf32>, i32 -> vector<8x128xf32>
    %c32_i32_47 = arith.constant 32 : i32
    %176 = tpu.dynamic_rotate %173 by %c32_i32_47 dim 1 : vector<8x128xf32>, i32 -> vector<8x128xf32>
    %177 = arith.mulf %174, %147 : vector<8x128xf32>
    %178 = arith.mulf %173, %175 : vector<8x128xf32>
    %179 = arith.addf %177, %178 : vector<8x128xf32>
    %180 = math.tanh %179 : vector<8x128xf32>
    %181 = arith.mulf %176, %180 : vector<8x128xf32>
    %182 = vector.extract_strided_slice %166 {offsets = [0, 128], sizes = [8, 128], strides = [1, 1]} : vector<8x256xf32> to vector<8x128xf32>
    %183 = arith.addf %21, %182 : vector<8x128xf32>
    %184 = arith.mulf %183, %15 : vector<8x128xf32>
    %185 = math.tanh %184 : vector<8x128xf32>
    %186 = arith.mulf %15, %185 : vector<8x128xf32>
    %187 = arith.addf %186, %18 : vector<8x128xf32>
    %c96_i32_48 = arith.constant 96 : i32
    %188 = tpu.dynamic_rotate %187 by %c96_i32_48 dim 1 : vector<8x128xf32>, i32 -> vector<8x128xf32>
    %c64_i32_49 = arith.constant 64 : i32
    %189 = tpu.dynamic_rotate %187 by %c64_i32_49 dim 1 : vector<8x128xf32>, i32 -> vector<8x128xf32>
    %c32_i32_50 = arith.constant 32 : i32
    %190 = tpu.dynamic_rotate %187 by %c32_i32_50 dim 1 : vector<8x128xf32>, i32 -> vector<8x128xf32>
    %191 = arith.mulf %188, %161 : vector<8x128xf32>
    %192 = arith.mulf %187, %189 : vector<8x128xf32>
    %193 = arith.addf %191, %192 : vector<8x128xf32>
    %194 = math.tanh %193 : vector<8x128xf32>
    %195 = arith.mulf %190, %194 : vector<8x128xf32>
    %196 = tpu.concatenate %181, %195 in 1 : vector<8x128xf32>, vector<8x128xf32> -> vector<8x256xf32>
    %197 = arith.truncf %196 : vector<8x256xf32> to vector<8x256xbf16>
    %cst_51 = arith.constant dense<0.000000e+00> : vector<8x256xf32>
    %198 = tpu.matmul %197, %0, %cst_51 {dimension_numbers = #tpu.dot_dimension_numbers<[1], [0], [0], [1], [0, 0, 1, 1], [], []>} : vector<8x256xbf16>, vector<256x256xbf16>, vector<8x256xf32> -> vector<8x256xf32>
    %199 = vector.extract_strided_slice %6 {offsets = [48, 0], sizes = [8, 128], strides = [1, 1]} : vector<64x128xf32> to vector<8x128xf32>
    %200 = vector.extract_strided_slice %198 {offsets = [0, 0], sizes = [8, 128], strides = [1, 1]} : vector<8x256xf32> to vector<8x128xf32>
    %201 = arith.addf %199, %200 : vector<8x128xf32>
    %202 = arith.mulf %201, %15 : vector<8x128xf32>
    %203 = math.tanh %202 : vector<8x128xf32>
    %204 = arith.mulf %15, %203 : vector<8x128xf32>
    %205 = arith.addf %204, %18 : vector<8x128xf32>
    %c96_i32_52 = arith.constant 96 : i32
    %206 = tpu.dynamic_rotate %205 by %c96_i32_52 dim 1 : vector<8x128xf32>, i32 -> vector<8x128xf32>
    %c64_i32_53 = arith.constant 64 : i32
    %207 = tpu.dynamic_rotate %205 by %c64_i32_53 dim 1 : vector<8x128xf32>, i32 -> vector<8x128xf32>
    %c32_i32_54 = arith.constant 32 : i32
    %208 = tpu.dynamic_rotate %205 by %c32_i32_54 dim 1 : vector<8x128xf32>, i32 -> vector<8x128xf32>
    %209 = arith.mulf %206, %179 : vector<8x128xf32>
    %210 = arith.mulf %205, %207 : vector<8x128xf32>
    %211 = arith.addf %209, %210 : vector<8x128xf32>
    %212 = math.tanh %211 : vector<8x128xf32>
    %213 = arith.mulf %208, %212 : vector<8x128xf32>
    %214 = vector.extract_strided_slice %198 {offsets = [0, 128], sizes = [8, 128], strides = [1, 1]} : vector<8x256xf32> to vector<8x128xf32>
    %215 = arith.addf %21, %214 : vector<8x128xf32>
    %216 = arith.mulf %215, %15 : vector<8x128xf32>
    %217 = math.tanh %216 : vector<8x128xf32>
    %218 = arith.mulf %15, %217 : vector<8x128xf32>
    %219 = arith.addf %218, %18 : vector<8x128xf32>
    %c96_i32_55 = arith.constant 96 : i32
    %220 = tpu.dynamic_rotate %219 by %c96_i32_55 dim 1 : vector<8x128xf32>, i32 -> vector<8x128xf32>
    %c64_i32_56 = arith.constant 64 : i32
    %221 = tpu.dynamic_rotate %219 by %c64_i32_56 dim 1 : vector<8x128xf32>, i32 -> vector<8x128xf32>
    %c32_i32_57 = arith.constant 32 : i32
    %222 = tpu.dynamic_rotate %219 by %c32_i32_57 dim 1 : vector<8x128xf32>, i32 -> vector<8x128xf32>
    %223 = arith.mulf %220, %193 : vector<8x128xf32>
    %224 = arith.mulf %219, %221 : vector<8x128xf32>
    %225 = arith.addf %223, %224 : vector<8x128xf32>
    %226 = math.tanh %225 : vector<8x128xf32>
    %227 = arith.mulf %222, %226 : vector<8x128xf32>
    %228 = tpu.concatenate %213, %227 in 1 : vector<8x128xf32>, vector<8x128xf32> -> vector<8x256xf32>
    %229 = arith.truncf %228 : vector<8x256xf32> to vector<8x256xbf16>
    %cst_58 = arith.constant dense<0.000000e+00> : vector<8x256xf32>
    %230 = tpu.matmul %229, %0, %cst_58 {dimension_numbers = #tpu.dot_dimension_numbers<[1], [0], [0], [1], [0, 0, 1, 1], [], []>} : vector<8x256xbf16>, vector<256x256xbf16>, vector<8x256xf32> -> vector<8x256xf32>
    %231 = vector.extract_strided_slice %6 {offsets = [56, 0], sizes = [8, 128], strides = [1, 1]} : vector<64x128xf32> to vector<8x128xf32>
    %232 = vector.extract_strided_slice %230 {offsets = [0, 0], sizes = [8, 128], strides = [1, 1]} : vector<8x256xf32> to vector<8x128xf32>
    %233 = arith.addf %231, %232 : vector<8x128xf32>
    %234 = arith.mulf %233, %15 : vector<8x128xf32>
    %235 = math.tanh %234 : vector<8x128xf32>
    %236 = arith.mulf %15, %235 : vector<8x128xf32>
    %237 = arith.addf %236, %18 : vector<8x128xf32>
    %c96_i32_59 = arith.constant 96 : i32
    %238 = tpu.dynamic_rotate %237 by %c96_i32_59 dim 1 : vector<8x128xf32>, i32 -> vector<8x128xf32>
    %c64_i32_60 = arith.constant 64 : i32
    %239 = tpu.dynamic_rotate %237 by %c64_i32_60 dim 1 : vector<8x128xf32>, i32 -> vector<8x128xf32>
    %c32_i32_61 = arith.constant 32 : i32
    %240 = tpu.dynamic_rotate %237 by %c32_i32_61 dim 1 : vector<8x128xf32>, i32 -> vector<8x128xf32>
    %241 = arith.mulf %238, %211 : vector<8x128xf32>
    %242 = arith.mulf %237, %239 : vector<8x128xf32>
    %243 = arith.addf %241, %242 : vector<8x128xf32>
    %244 = math.tanh %243 : vector<8x128xf32>
    %245 = arith.mulf %240, %244 : vector<8x128xf32>
    %246 = vector.extract_strided_slice %230 {offsets = [0, 128], sizes = [8, 128], strides = [1, 1]} : vector<8x256xf32> to vector<8x128xf32>
    %247 = arith.addf %21, %246 : vector<8x128xf32>
    %248 = arith.mulf %247, %15 : vector<8x128xf32>
    %249 = math.tanh %248 : vector<8x128xf32>
    %250 = arith.mulf %15, %249 : vector<8x128xf32>
    %251 = arith.addf %250, %18 : vector<8x128xf32>
    %c96_i32_62 = arith.constant 96 : i32
    %252 = tpu.dynamic_rotate %251 by %c96_i32_62 dim 1 : vector<8x128xf32>, i32 -> vector<8x128xf32>
    %c64_i32_63 = arith.constant 64 : i32
    %253 = tpu.dynamic_rotate %251 by %c64_i32_63 dim 1 : vector<8x128xf32>, i32 -> vector<8x128xf32>
    %c32_i32_64 = arith.constant 32 : i32
    %254 = tpu.dynamic_rotate %251 by %c32_i32_64 dim 1 : vector<8x128xf32>, i32 -> vector<8x128xf32>
    %255 = arith.mulf %252, %225 : vector<8x128xf32>
    %256 = arith.mulf %251, %253 : vector<8x128xf32>
    %257 = arith.addf %255, %256 : vector<8x128xf32>
    %258 = math.tanh %257 : vector<8x128xf32>
    %259 = arith.mulf %254, %258 : vector<8x128xf32>
    %260 = tpu.concatenate %245, %259 in 1 : vector<8x128xf32>, vector<8x128xf32> -> vector<8x256xf32>
    %261 = arith.truncf %260 : vector<8x256xf32> to vector<8x256xbf16>
    %cst_65 = arith.constant dense<0.000000e+00> : vector<8x256xf32>
    %262 = tpu.matmul %261, %0, %cst_65 {dimension_numbers = #tpu.dot_dimension_numbers<[1], [0], [0], [1], [0, 0, 1, 1], [], []>} : vector<8x256xbf16>, vector<256x256xbf16>, vector<8x256xf32> -> vector<8x256xf32>
    %263 = vector.extract_strided_slice %262 {offsets = [0, 128], sizes = [8, 128], strides = [1, 1]} : vector<8x256xf32> to vector<8x128xf32>
    %264 = arith.addf %21, %263 : vector<8x128xf32>
    %265 = arith.mulf %264, %15 : vector<8x128xf32>
    %266 = math.tanh %265 : vector<8x128xf32>
    %267 = arith.mulf %15, %266 : vector<8x128xf32>
    %268 = arith.addf %267, %18 : vector<8x128xf32>
    %c96_i32_66 = arith.constant 96 : i32
    %269 = tpu.dynamic_rotate %268 by %c96_i32_66 dim 1 : vector<8x128xf32>, i32 -> vector<8x128xf32>
    %c64_i32_67 = arith.constant 64 : i32
    %270 = tpu.dynamic_rotate %268 by %c64_i32_67 dim 1 : vector<8x128xf32>, i32 -> vector<8x128xf32>
    %c32_i32_68 = arith.constant 32 : i32
    %271 = tpu.dynamic_rotate %268 by %c32_i32_68 dim 1 : vector<8x128xf32>, i32 -> vector<8x128xf32>
    %272 = arith.mulf %269, %257 : vector<8x128xf32>
    %273 = arith.mulf %268, %270 : vector<8x128xf32>
    %274 = arith.addf %272, %273 : vector<8x128xf32>
    %275 = math.tanh %274 : vector<8x128xf32>
    %276 = arith.mulf %271, %275 : vector<8x128xf32>
    %277 = arith.truncf %276 : vector<8x128xf32> to vector<8x128xbf16>
    %c0_69 = arith.constant 0 : index
    %c0_70 = arith.constant 0 : index
    %278 = vector.load %arg5[%c0_69, %c0_70] : memref<128x128xbf16, #tpu.memory_space<vmem>>, vector<128x128xbf16>
    %cst_71 = arith.constant dense<0.000000e+00> : vector<8x128xf32>
    %279 = tpu.matmul %277, %278, %cst_71 {dimension_numbers = #tpu.dot_dimension_numbers<[1], [0], [0], [1], [0, 0, 1, 1], [], []>} : vector<8x128xbf16>, vector<128x128xbf16>, vector<8x128xf32> -> vector<8x128xf32>
    %c0_72 = arith.constant 0 : index
    %c0_73 = arith.constant 0 : index
    %280 = vector.load %arg6[%c0_72, %c0_73] : memref<1x128xf32, #tpu.memory_space<vmem>>, vector<1x128xf32>
    %281 = vector.broadcast %280 : vector<1x128xf32> to vector<8x128xf32>
    %282 = arith.addf %279, %281 : vector<8x128xf32>
    %283 = math.tanh %282 : vector<8x128xf32>
    %284 = arith.truncf %283 : vector<8x128xf32> to vector<8x128xbf16>
    %c0_74 = arith.constant 0 : index
    %c0_75 = arith.constant 0 : index
    %285 = vector.load %arg7[%c0_74, %c0_75] : memref<128x128xbf16, #tpu.memory_space<vmem>>, vector<128x128xbf16>
    %cst_76 = arith.constant dense<0.000000e+00> : vector<8x128xf32>
    %286 = tpu.matmul %284, %285, %cst_76 {dimension_numbers = #tpu.dot_dimension_numbers<[1], [0], [0], [1], [0, 0, 1, 1], [], []>} : vector<8x128xbf16>, vector<128x128xbf16>, vector<8x128xf32> -> vector<8x128xf32>
    %c0_77 = arith.constant 0 : index
    %c0_78 = arith.constant 0 : index
    %287 = vector.load %arg8[%c0_77, %c0_78] : memref<1x128xf32, #tpu.memory_space<vmem>>, vector<1x128xf32>
    %288 = vector.broadcast %287 : vector<1x128xf32> to vector<8x128xf32>
    %289 = arith.addf %286, %288 : vector<8x128xf32>
    %290 = math.tanh %289 : vector<8x128xf32>
    %291 = arith.truncf %290 : vector<8x128xf32> to vector<8x128xbf16>
    %c0_79 = arith.constant 0 : index
    %c0_80 = arith.constant 0 : index
    %292 = vector.load %arg9[%c0_79, %c0_80] : memref<128x128xbf16, #tpu.memory_space<vmem>>, vector<128x128xbf16>
    %cst_81 = arith.constant dense<0.000000e+00> : vector<8x128xf32>
    %293 = tpu.matmul %291, %292, %cst_81 {dimension_numbers = #tpu.dot_dimension_numbers<[1], [0], [0], [1], [0, 0, 1, 1], [], []>} : vector<8x128xbf16>, vector<128x128xbf16>, vector<8x128xf32> -> vector<8x128xf32>
    %c0_82 = arith.constant 0 : index
    %c0_83 = arith.constant 0 : index
    %294 = vector.load %arg10[%c0_82, %c0_83] : memref<1x128xf32, #tpu.memory_space<vmem>>, vector<1x128xf32>
    %295 = vector.broadcast %294 : vector<1x128xf32> to vector<8x128xf32>
    %296 = arith.addf %293, %295 : vector<8x128xf32>
    %c0_84 = arith.constant 0 : index
    %c0_85 = arith.constant 0 : index
    %297 = vector.load %arg11[%c0_84, %c0_85] : memref<8x128xf32, #tpu.memory_space<vmem>>, vector<8x128xf32>
    tpu.vector_store %arg11[%c0_84, %c0_85], %296 {strides = array<i32>} : memref<8x128xf32, #tpu.memory_space<vmem>>, vector<8x128xf32>,
    return
  }
}

</mosaic_0001>

<llo_original>
// kernel: lstm_model_forward.1
$region0: #{lstm_model_forward.1}
  #allocation0 [shape = 'u32[]', space=smem, size = 0x4, offset = 0x4, fixed_abs, tag = 'smem constant byte address 0x4 - core index']
  #allocation1 [shape = 'u32[144,128]{1,0:T(1,128)}', space=vmem, size = 0x12000, scoped, tag = 'internal scratch']
  %s0 = inlined_call_operand.vmem [shape: bf16[64,128], index: 0, kind: input, shape index: {}]
  %s1 = inlined_call_operand.vmem [shape: bf16[128,128], index: 1, kind: input, shape index: {}]
  %s2 = inlined_call_operand.vmem [shape: f32[1,128], index: 2, kind: input, shape index: {}]
  %s3 = inlined_call_operand.hbm [shape: bf16[256,256], index: 3, kind: input, shape index: {}]
  %s4 = inlined_call_operand.vmem [shape: f32[1,128], index: 4, kind: input, shape index: {}]
  %s5 = inlined_call_operand.hbm [shape: bf16[128,128], index: 5, kind: input, shape index: {}]
  %s6 = inlined_call_operand.vmem [shape: f32[1,128], index: 6, kind: input, shape index: {}]
  %s7 = inlined_call_operand.hbm [shape: bf16[128,128], index: 7, kind: input, shape index: {}]
  %s8 = inlined_call_operand.vmem [shape: f32[1,128], index: 8, kind: input, shape index: {}]
  %s9 = inlined_call_operand.hbm [shape: bf16[128,128], index: 9, kind: input, shape index: {}]
  %s10 = inlined_call_operand.vmem [shape: f32[1,128], index: 10, kind: input, shape index: {}]
  %s11 = inlined_call_operand.vmem [shape: f32[8,128], index: 11, kind: output, shape index: {}]
  %s12 = sld [smem:[#allocation0]]
  $region70: #{lstm_model_forward.1} parent=0
    _
  %s14 = ssub.s32 1, %s12
  %s15 = scalar_select 0, %s14, %s12
  $region1: #{lstm_model_forward.1} parent=0
    #allocation2 [shape = 'u8[131072]{0}', space=vmem, size = 0x20000, scoped, tag = 'input window, operand 3, single buffered']
    #allocation3 [shape = 's32[1]{0}', space=sflag, size = 0x4, scoped, tag = 'scoped memory for lstm_model_forward.1']
    #allocation4 [shape = 'u8[32768]{0}', space=vmem, size = 0x8000, scoped, tag = 'input window, operand 5, single buffered']
    #allocation5 [shape = 's32[1]{0}', space=sflag, size = 0x4, scoped, tag = 'scoped memory for lstm_model_forward.1']
    #allocation6 [shape = 'u8[32768]{0}', space=vmem, size = 0x8000, scoped, tag = 'input window, operand 7, single buffered']
    #allocation7 [shape = 'u8[32768]{0}', space=vmem, size = 0x8000, scoped, tag = 'input window, operand 9, single buffered']
    #allocation8 [shape = 's32[1]{0}', space=sflag, size = 0x4, scoped, tag = 'scoped memory for lstm_model_forward.1']
    %16 = vsyncpa [#allocation3], 0
    %17 = vsyncpa [#allocation5], 0
    %18 = vsyncpa [#allocation8], 0
    // Predicated region
    $region2: #{lstm_model_forward.1} parent=1 // pred_check
      _
    $region3: #{lstm_model_forward.1} parent=1 // pred_check_branch
      %20 = sbr.rel (0) target = $region5
    $region4: #{lstm_model_forward.1} parent=1 // pred_region
      _
    $region5: #{lstm_model_forward.1} parent=1 // pred_fallthru
      _
    // Predicated region
    $region6: #{lstm_model_forward.1} parent=1 // pred_check
      _
    $region7: #{lstm_model_forward.1} parent=1 // pred_check_branch
      %22 = sbr.rel (0) target = $region9
    $region8: #{lstm_model_forward.1} parent=1 // pred_region
      _
    $region9: #{lstm_model_forward.1} parent=1 // pred_fallthru
      _
    // Predicated region
    $region10: #{lstm_model_forward.1} parent=1 // pred_check
      _
    $region11: #{lstm_model_forward.1} parent=1 // pred_check_branch
      %24 = sbr.rel (0) target = $region13
    $region12: #{lstm_model_forward.1} parent=1 // pred_region
      _
    $region13: #{lstm_model_forward.1} parent=1 // pred_fallthru
      _
    // Predicated region
    $region14: #{lstm_model_forward.1} parent=1 // pred_check
      _
    $region15: #{lstm_model_forward.1} parent=1 // pred_check_branch
      %26 = sbr.rel (0) target = $region17
    $region16: #{lstm_model_forward.1} parent=1 // pred_region
      %s28 = ssub.s32 4096, 4096
      %29 = vsyncadd [#allocation3], %s28
      %s30 = sshll.u32 [#allocation2], 4
      %s31 = int_to_ptr.vmem [resolvable:$true] %s30
      %36 = dma.hbm_to_vmem [thread:$0]  %s3, 4096, %s31, [#allocation3], 128, 128, 8
    $region17: #{lstm_model_forward.1} parent=1 // pred_fallthru
      _
    // Predicated region
    $region18: #{lstm_model_forward.1} parent=1 // pred_check
      _
    $region19: #{lstm_model_forward.1} parent=1 // pred_check_branch
      %38 = sbr.rel (0) target = $region21
    $region20: #{lstm_model_forward.1} parent=1 // pred_region
      _
    $region21: #{lstm_model_forward.1} parent=1 // pred_fallthru
      _
    // Predicated region
    $region22: #{lstm_model_forward.1} parent=1 // pred_check
      _
    $region23: #{lstm_model_forward.1} parent=1 // pred_check_branch
      %40 = sbr.rel (0) target = $region25
    $region24: #{lstm_model_forward.1} parent=1 // pred_region
      %s42 = ssub.s32 1024, 1024
      %43 = vsyncadd [#allocation5], %s42
      %s44 = sshll.u32 [#allocation4], 4
      %s45 = int_to_ptr.vmem [resolvable:$true] %s44
      %50 = dma.hbm_to_vmem [thread:$0]  %s5, 1024, %s45, [#allocation5], 64, 64, 4
    $region25: #{lstm_model_forward.1} parent=1 // pred_fallthru
      _
    // Predicated region
    $region26: #{lstm_model_forward.1} parent=1 // pred_check
      _
    $region27: #{lstm_model_forward.1} parent=1 // pred_check_branch
      %52 = sbr.rel (0) target = $region29
    $region28: #{lstm_model_forward.1} parent=1 // pred_region
      _
    $region29: #{lstm_model_forward.1} parent=1 // pred_fallthru
      _
    // Predicated region
    $region30: #{lstm_model_forward.1} parent=1 // pred_check
      _
    $region31: #{lstm_model_forward.1} parent=1 // pred_check_branch
      %54 = sbr.rel (0) target = $region33
    $region32: #{lstm_model_forward.1} parent=1 // pred_region
      %s56 = ssub.s32 1024, 1024
      %57 = vsyncadd [#allocation5], %s56
      %s58 = sshll.u32 [#allocation6], 4
      %s59 = int_to_ptr.vmem [resolvable:$true] %s58
      %64 = dma.hbm_to_vmem [thread:$0]  %s7, 1024, %s59, [#allocation5], 64, 64, 4
    $region33: #{lstm_model_forward.1} parent=1 // pred_fallthru
      _
    // Predicated region
    $region34: #{lstm_model_forward.1} parent=1 // pred_check
      _
    $region35: #{lstm_model_forward.1} parent=1 // pred_check_branch
      %66 = sbr.rel (0) target = $region37
    $region36: #{lstm_model_forward.1} parent=1 // pred_region
      _
    $region37: #{lstm_model_forward.1} parent=1 // pred_fallthru
      _
    // Predicated region
    $region38: #{lstm_model_forward.1} parent=1 // pred_check
      _
    $region39: #{lstm_model_forward.1} parent=1 // pred_check_branch
      %68 = sbr.rel (0) target = $region41
    $region40: #{lstm_model_forward.1} parent=1 // pred_region
      %s70 = ssub.s32 1024, 1024
      %71 = vsyncadd [#allocation8], %s70
      %s72 = sshll.u32 [#allocation7], 4
      %s73 = int_to_ptr.vmem [resolvable:$true] %s72
      %78 = dma.hbm_to_vmem [thread:$0]  %s9, 1024, %s73, [#allocation8], 64, 64, 4
    $region41: #{lstm_model_forward.1} parent=1 // pred_fallthru
      _
    // Predicated region
    $region42: #{lstm_model_forward.1} parent=1 // pred_check
      _
    $region43: #{lstm_model_forward.1} parent=1 // pred_check_branch
      %80 = sbr.rel (0) target = $region45
    $region44: #{lstm_model_forward.1} parent=1 // pred_region
      _
    $region45: #{lstm_model_forward.1} parent=1 // pred_fallthru
      _
    // Predicated region
    $region46: #{lstm_model_forward.1} parent=1 // pred_check
      _
    $region47: #{lstm_model_forward.1} parent=1 // pred_check_branch
      %82 = sbr.rel (0) target = $region49
    $region48: #{lstm_model_forward.1} parent=1 // pred_region
      %83 = dma.done [#allocation3], 4096
    $region49: #{lstm_model_forward.1} parent=1 // pred_fallthru
      _
    // Predicated region
    $region50: #{lstm_model_forward.1} parent=1 // pred_check
      _
    $region51: #{lstm_model_forward.1} parent=1 // pred_check_branch
      %85 = sbr.rel (0) target = $region53
    $region52: #{lstm_model_forward.1} parent=1 // pred_region
      %86 = dma.done [#allocation5], 1024
    $region53: #{lstm_model_forward.1} parent=1 // pred_fallthru
      _
    // Predicated region
    $region54: #{lstm_model_forward.1} parent=1 // pred_check
      _
    $region55: #{lstm_model_forward.1} parent=1 // pred_check_branch
      %88 = sbr.rel (0) target = $region57
    $region56: #{lstm_model_forward.1} parent=1 // pred_region
      %89 = dma.done [#allocation5], 1024
    $region57: #{lstm_model_forward.1} parent=1 // pred_fallthru
      _
    // Predicated region
    $region58: #{lstm_model_forward.1} parent=1 // pred_check
      _
    $region59: #{lstm_model_forward.1} parent=1 // pred_check_branch
      %91 = sbr.rel (0) target = $region61
    $region60: #{lstm_model_forward.1} parent=1 // pred_region
      %92 = dma.done [#allocation8], 1024
    $region61: #{lstm_model_forward.1} parent=1 // pred_fallthru
      _
    %v94 = vld [vmem:[#allocation2] sm:$0xff]
    %v95 = vld [vmem:[#allocation2 + $0x8] sm:$0xff]
    %v96 = vld [vmem:[#allocation2 + $0x10] sm:$0xff]
    %v97 = vld [vmem:[#allocation2 + $0x18] sm:$0xff]
    %v98 = vld [vmem:[#allocation2 + $0x20] sm:$0xff]
    %v99 = vld [vmem:[#allocation2 + $0x28] sm:$0xff]
    %v100 = vld [vmem:[#allocation2 + $0x30] sm:$0xff]
    %v101 = vld [vmem:[#allocation2 + $0x38] sm:$0xff]
    %v102 = vld [vmem:[#allocation2 + $0x40] sm:$0xff]
    %v103 = vld [vmem:[#allocation2 + $0x48] sm:$0xff]
    %v104 = vld [vmem:[#allocation2 + $0x50] sm:$0xff]
    %v105 = vld [vmem:[#allocation2 + $0x58] sm:$0xff]
    %v106 = vld [vmem:[#allocation2 + $0x60] sm:$0xff]
    %v107 = vld [vmem:[#allocation2 + $0x68] sm:$0xff]
    %v108 = vld [vmem:[#allocation2 + $0x70] sm:$0xff]
    %v109 = vld [vmem:[#allocation2 + $0x78] sm:$0xff]
    %v110 = vld [vmem:[#allocation2 + $0x80] sm:$0xff]
    %v111 = vld [vmem:[#allocation2 + $0x88] sm:$0xff]
    %v112 = vld [vmem:[#allocation2 + $0x90] sm:$0xff]
    %v113 = vld [vmem:[#allocation2 + $0x98] sm:$0xff]
    %v114 = vld [vmem:[#allocation2 + $0xa0] sm:$0xff]
    %v115 = vld [vmem:[#allocation2 + $0xa8] sm:$0xff]
    %v116 = vld [vmem:[#allocation2 + $0xb0] sm:$0xff]
    %v117 = vld [vmem:[#allocation2 + $0xb8] sm:$0xff]
    %v118 = vld [vmem:[#allocation2 + $0xc0] sm:$0xff]
    %v119 = vld [vmem:[#allocation2 + $0xc8] sm:$0xff]
    %v120 = vld [vmem:[#allocation2 + $0xd0] sm:$0xff]
    %v121 = vld [vmem:[#allocation2 + $0xd8] sm:$0xff]
    %v122 = vld [vmem:[#allocation2 + $0xe0] sm:$0xff]
    %v123 = vld [vmem:[#allocation2 + $0xe8] sm:$0xff]
    %v124 = vld [vmem:[#allocation2 + $0xf0] sm:$0xff]
    %v125 = vld [vmem:[#allocation2 + $0xf8] sm:$0xff]
    %v126 = vld [vmem:[%s0] sm:$0xf]
    %v127 = vld [vmem:[%s0 + $0x4] sm:$0xf]
    %v128 = vld [vmem:[%s0 + $0x8] sm:$0xf]
    %v129 = vld [vmem:[%s0 + $0xc] sm:$0xf]
    %v130 = vld [vmem:[%s0 + $0x10] sm:$0xf]
    %v131 = vld [vmem:[%s0 + $0x14] sm:$0xf]
    %v132 = vld [vmem:[%s0 + $0x18] sm:$0xf]
    %v133 = vld [vmem:[%s0 + $0x1c] sm:$0xf]
    %v134 = vld [vmem:[%s1] sm:$0xf]
    %v135 = vld [vmem:[%s1 + $0x4] sm:$0xf]
    %v136 = vld [vmem:[%s1 + $0x8] sm:$0xf]
    %v137 = vld [vmem:[%s1 + $0xc] sm:$0xf]
    %v138 = vld [vmem:[%s1 + $0x10] sm:$0xf]
    %v139 = vld [vmem:[%s1 + $0x14] sm:$0xf]
    %v140 = vld [vmem:[%s1 + $0x18] sm:$0xf]
    %v141 = vld [vmem:[%s1 + $0x1c] sm:$0xf]
    %v142 = vld [vmem:[%s1 + $0x20] sm:$0xf]
    %v143 = vld [vmem:[%s1 + $0x24] sm:$0xf]
    %v144 = vld [vmem:[%s1 + $0x28] sm:$0xf]
    %v145 = vld [vmem:[%s1 + $0x2c] sm:$0xf]
    %v146 = vld [vmem:[%s1 + $0x30] sm:$0xf]
    %v147 = vld [vmem:[%s1 + $0x34] sm:$0xf]
    %v148 = vld [vmem:[%s1 + $0x38] sm:$0xf]
    %v149 = vld [vmem:[%s1 + $0x3c] sm:$0xf]
    %v150 = vld [vmem:[%s2] sm:$0x1]
    %v152 = vlaneseq
    %v153 = vshrl.u32 %v152, 7
    %v154 = vsub.s32 0, %v153
    %v155 = vrot.slane %v150, %v154
    %v165 = vunpack.c.l.b16 %v126
    %v166 = vunpack.c.l.b16 %v127
    %v167 = vunpack.c.l.b16 %v128
    %v168 = vunpack.c.l.b16 %v129
    %v169 = vunpack.c.l.b16 %v130
    %v170 = vunpack.c.l.b16 %v131
    %v171 = vunpack.c.l.b16 %v132
    %v172 = vunpack.c.l.b16 %v133
    %v173 = vpack.c.b16 %v166, %v165
    %v174 = vpack.c.b16 %v168, %v167
    %v175 = vpack.c.b16 %v170, %v169
    %v176 = vpack.c.b16 %v172, %v171
    %v197 = vunpack.c.l.b16 %v134
    %v198 = vunpack.c.l.b16 %v135
    %v199 = vunpack.c.l.b16 %v136
    %v200 = vunpack.c.l.b16 %v137
    %v201 = vunpack.c.l.b16 %v138
    %v202 = vunpack.c.l.b16 %v139
    %v203 = vunpack.c.l.b16 %v140
    %v204 = vunpack.c.l.b16 %v141
    %v205 = vunpack.c.l.b16 %v142
    %v206 = vunpack.c.l.b16 %v143
    %v207 = vunpack.c.l.b16 %v144
    %v208 = vunpack.c.l.b16 %v145
    %v209 = vunpack.c.l.b16 %v146
    %v210 = vunpack.c.l.b16 %v147
    %v211 = vunpack.c.l.b16 %v148
    %v212 = vunpack.c.l.b16 %v149
    %v213 = vpack.c.b16 %v198, %v197
    %v214 = vpack.c.b16 %v200, %v199
    %v215 = vpack.c.b16 %v202, %v201
    %v216 = vpack.c.b16 %v204, %v203
    %v217 = vpack.c.b16 %v206, %v205
    %v218 = vpack.c.b16 %v208, %v207
    %v219 = vpack.c.b16 %v210, %v209
    %v220 = vpack.c.b16 %v212, %v211
    %229 = vmatprep.subr.bf16.mxu0 0
    %230 = vmatpush1.bf16.msra.mxu0 %v220
    %231 = vmatprep.subr.bf16.mxu0 0
    %232 = vmatpush1.bf16.msra.mxu0 %v219
    %233 = vmatprep.subr.bf16.mxu0 0
    %234 = vmatpush1.bf16.msra.mxu0 %v218
    %235 = vmatprep.subr.bf16.mxu0 0
    %236 = vmatpush1.bf16.msra.mxu0 %v217
    %237 = vmatprep.subr.bf16.mxu0 0
    %238 = vmatpush1.bf16.msra.mxu0 %v216
    %239 = vmatprep.subr.bf16.mxu0 0
    %240 = vmatpush1.bf16.msra.mxu0 %v215
    %241 = vmatprep.subr.bf16.mxu0 0
    %242 = vmatpush1.bf16.msra.mxu0 %v214
    %243 = vmatprep.subr.bf16.mxu0 0
    %244 = vmatpush1.bf16.msra.mxu0 %v213
    %245 = vmatprep.subr.bf16.mxu0 0
    %246 = vmatpush2.bf16.msra.mxu0 0
    %247 = vmatprep.subr.bf16.mxu0 0
    %248 = vmatpush2.bf16.msra.mxu0 0
    %249 = vmatprep.subr.bf16.mxu0 0
    %250 = vmatpush2.bf16.msra.mxu0 0
    %251 = vmatprep.subr.bf16.mxu0 0
    %252 = vmatpush2.bf16.msra.mxu0 0
    %253 = vmatprep.subr.bf16.mxu0 0
    %254 = vmatpush2.bf16.msra.mxu0 0
    %255 = vmatprep.subr.bf16.mxu0 0
    %256 = vmatpush2.bf16.msra.mxu0 0
    %257 = vmatprep.subr.bf16.mxu0 0
    %258 = vmatpush2.bf16.msra.mxu0 0
    %259 = vmatprep.subr.bf16.mxu0 0
    %260 = vmatpush2.bf16.msra.mxu0 0
    %261 = vmatprep.mubr.bf16.mxu0 0
    %262 = vmatmul.mubr.bf16.gmra.mxu0 %v173
    %v263 = vpop.f32.mrf.mxu0
    %v264 = vadd.f32 %v155, %v263
    %v265 = vpop.f32.mrf.mxu0
    %v266 = vpop.f32.mrf.mxu0
    %v267 = vadd.f32 %v155, %v266
    %v268 = vpop.f32.mrf.mxu0
    %269 = vmatprep.mubr.bf16.mxu0 0
    %270 = vmatmul.mubr.bf16.gmra.mxu0 %v174
    %v271 = vpop.f32.mrf.mxu0
    %v272 = vadd.f32 %v155, %v271
    %v273 = vpop.f32.mrf.mxu0
    %v274 = vpop.f32.mrf.mxu0
    %v275 = vadd.f32 %v155, %v274
    %v276 = vpop.f32.mrf.mxu0
    %277 = vmatprep.mubr.bf16.mxu0 0
    %278 = vmatmul.mubr.bf16.gmra.mxu0 %v175
    %v279 = vpop.f32.mrf.mxu0
    %v280 = vadd.f32 %v155, %v279
    %v281 = vpop.f32.mrf.mxu0
    %v282 = vpop.f32.mrf.mxu0
    %v283 = vadd.f32 %v155, %v282
    %v284 = vpop.f32.mrf.mxu0
    %285 = vmatprep.mubr.bf16.mxu0 0
    %286 = vmatmul.mubr.bf16.gmra.mxu0 %v176
    %v287 = vpop.f32.mrf.mxu0
    %v288 = vadd.f32 %v155, %v287
    %v289 = vpop.f32.mrf.mxu0
    %v290 = vpop.f32.mrf.mxu0
    %v291 = vadd.f32 %v155, %v290
    %v292 = vpop.f32.mrf.mxu0
    %293 = vdwg.mxu0
    %v294 = vlaneseq
    %v295 = vand.u32 %v294, 127
    %vm296 = vcmp.ge.s32.totalorder %v295, 64
    %vm297 = vcmp.lt.s32.totalorder %v295, 96
    %vm298 = vmand %vm296, %vm297
    %v299 = vsel %vm298, 1.0, 0.5
    %v300 = vsel %vm298, 0.0, 0.5
    %v301 = vld [vmem:[%s4] sm:$0x1]
    %v303 = vlaneseq
    %v304 = vshrl.u32 %v303, 7
    %v305 = vsub.s32 0, %v304
    %v306 = vrot.slane %v301, %v305
    %v308 = vmul.f32 %v264, %v299
    %v309 = vtanh.pop %v308
    %v310 = vmul.f32 %v299, %v309
    %v311 = vadd.f32 %v310, %v300
    %312 = vrot.lane.b32.xlu0 %v311, 96
    %v313 = vpop.permute.xlu0 %312
    %314 = vrot.lane.b32.xlu0 %v311, 64
    %v315 = vpop.permute.xlu0 %314
    %316 = vrot.lane.b32.xlu0 %v311, 32
    %v317 = vpop.permute.xlu0 %316
    %v318 = vmul.f32 %v313, 0.0
    %v319 = vmul.f32 %v311, %v315
    %v320 = vadd.f32 %v318, %v319
    %v321 = vtanh.pop %v320
    %v322 = vmul.f32 %v317, %v321
    %v323 = vpack.c.bf16 %v322, %v322
    %v324 = vpack.c.bf16 0.0, 0.0
    %v357 = vunpack.c.l.b16 %v94
    %v358 = vunpack.c.h.b16 %v94
    %v359 = vunpack.c.l.b16 %v95
    %v360 = vunpack.c.h.b16 %v95
    %v361 = vunpack.c.l.b16 %v96
    %v362 = vunpack.c.h.b16 %v96
    %v363 = vunpack.c.l.b16 %v97
    %v364 = vunpack.c.h.b16 %v97
    %v365 = vunpack.c.l.b16 %v98
    %v366 = vunpack.c.h.b16 %v98
    %v367 = vunpack.c.l.b16 %v99
    %v368 = vunpack.c.h.b16 %v99
    %v369 = vunpack.c.l.b16 %v100
    %v370 = vunpack.c.h.b16 %v100
    %v371 = vunpack.c.l.b16 %v101
    %v372 = vunpack.c.h.b16 %v101
    %v373 = vunpack.c.l.b16 %v102
    %v374 = vunpack.c.h.b16 %v102
    %v375 = vunpack.c.l.b16 %v103
    %v376 = vunpack.c.h.b16 %v103
    %v377 = vunpack.c.l.b16 %v104
    %v378 = vunpack.c.h.b16 %v104
    %v379 = vunpack.c.l.b16 %v105
    %v380 = vunpack.c.h.b16 %v105
    %v381 = vunpack.c.l.b16 %v106
    %v382 = vunpack.c.h.b16 %v106
    %v383 = vunpack.c.l.b16 %v107
    %v384 = vunpack.c.h.b16 %v107
    %v385 = vunpack.c.l.b16 %v108
    %v386 = vunpack.c.h.b16 %v108
    %v387 = vunpack.c.l.b16 %v109
    %v388 = vunpack.c.h.b16 %v109
    %v389 = vunpack.c.l.b16 %v110
    %v390 = vunpack.c.h.b16 %v110
    %v391 = vunpack.c.l.b16 %v111
    %v392 = vunpack.c.h.b16 %v111
    %v393 = vunpack.c.l.b16 %v112
    %v394 = vunpack.c.h.b16 %v112
    %v395 = vunpack.c.l.b16 %v113
    %v396 = vunpack.c.h.b16 %v113
    %v397 = vunpack.c.l.b16 %v114
    %v398 = vunpack.c.h.b16 %v114
    %v399 = vunpack.c.l.b16 %v115
    %v400 = vunpack.c.h.b16 %v115
    %v401 = vunpack.c.l.b16 %v116
    %v402 = vunpack.c.h.b16 %v116
    %v403 = vunpack.c.l.b16 %v117
    %v404 = vunpack.c.h.b16 %v117
    %v405 = vunpack.c.l.b16 %v118
    %v406 = vunpack.c.h.b16 %v118
    %v407 = vunpack.c.l.b16 %v119
    %v408 = vunpack.c.h.b16 %v119
    %v409 = vunpack.c.l.b16 %v120
    %v410 = vunpack.c.h.b16 %v120
    %v411 = vunpack.c.l.b16 %v121
    %v412 = vunpack.c.h.b16 %v121
    %v413 = vunpack.c.l.b16 %v122
    %v414 = vunpack.c.h.b16 %v122
    %v415 = vunpack.c.l.b16 %v123
    %v416 = vunpack.c.h.b16 %v123
    %v417 = vunpack.c.l.b16 %v124
    %v418 = vunpack.c.h.b16 %v124
    %v419 = vunpack.c.l.b16 %v125
    %v420 = vunpack.c.h.b16 %v125
    %v421 = vpack.c.b16 %v359, %v357
    %v422 = vpack.c.b16 %v360, %v358
    %v423 = vpack.c.b16 %v363, %v361
    %v424 = vpack.c.b16 %v364, %v362
    %v425 = vpack.c.b16 %v367, %v365
    %v426 = vpack.c.b16 %v368, %v366
    %v427 = vpack.c.b16 %v371, %v369
    %v428 = vpack.c.b16 %v372, %v370
    %v429 = vpack.c.b16 %v375, %v373
    %v430 = vpack.c.b16 %v376, %v374
    %v431 = vpack.c.b16 %v379, %v377
    %v432 = vpack.c.b16 %v380, %v378
    %v433 = vpack.c.b16 %v383, %v381
    %v434 = vpack.c.b16 %v384, %v382
    %v435 = vpack.c.b16 %v387, %v385
    %v436 = vpack.c.b16 %v388, %v386
    %v437 = vpack.c.b16 %v391, %v389
    %v438 = vpack.c.b16 %v392, %v390
    %v439 = vpack.c.b16 %v395, %v393
    %v440 = vpack.c.b16 %v396, %v394
    %v441 = vpack.c.b16 %v399, %v397
    %v442 = vpack.c.b16 %v400, %v398
    %v443 = vpack.c.b16 %v403, %v401
    %v444 = vpack.c.b16 %v404, %v402
    %v445 = vpack.c.b16 %v407, %v405
    %v446 = vpack.c.b16 %v408, %v406
    %v447 = vpack.c.b16 %v411, %v409
    %v448 = vpack.c.b16 %v412, %v410
    %v449 = vpack.c.b16 %v415, %v413
    %v450 = vpack.c.b16 %v416, %v414
    %v451 = vpack.c.b16 %v419, %v417
    %v452 = vpack.c.b16 %v420, %v418
    %485 = vmatprep.subr.bf16.mxu0 %v436
    %486 = vmatpush1.bf16.msra.mxu0 %v435
    %487 = vmatprep.subr.bf16.mxu0 %v434
    %488 = vmatpush1.bf16.msra.mxu0 %v433
    %489 = vmatprep.subr.bf16.mxu0 %v432
    %490 = vmatpush1.bf16.msra.mxu0 %v431
    %491 = vmatprep.subr.bf16.mxu0 %v430
    %492 = vmatpush1.bf16.msra.mxu0 %v429
    %493 = vmatprep.subr.bf16.mxu0 %v428
    %494 = vmatpush1.bf16.msra.mxu0 %v427
    %495 = vmatprep.subr.bf16.mxu0 %v426
    %496 = vmatpush1.bf16.msra.mxu0 %v425
    %497 = vmatprep.subr.bf16.mxu0 %v424
    %498 = vmatpush1.bf16.msra.mxu0 %v423
    %499 = vmatprep.subr.bf16.mxu0 %v422
    %500 = vmatpush1.bf16.msra.mxu0 %v421
    %501 = vmatprep.subr.bf16.mxu0 %v452
    %502 = vmatpush2.bf16.msra.mxu0 %v451
    %503 = vmatprep.subr.bf16.mxu0 %v450
    %504 = vmatpush2.bf16.msra.mxu0 %v449
    %505 = vmatprep.subr.bf16.mxu0 %v448
    %506 = vmatpush2.bf16.msra.mxu0 %v447
    %507 = vmatprep.subr.bf16.mxu0 %v446
    %508 = vmatpush2.bf16.msra.mxu0 %v445
    %509 = vmatprep.subr.bf16.mxu0 %v444
    %510 = vmatpush2.bf16.msra.mxu0 %v443
    %511 = vmatprep.subr.bf16.mxu0 %v442
    %512 = vmatpush2.bf16.msra.mxu0 %v441
    %513 = vmatprep.subr.bf16.mxu0 %v440
    %514 = vmatpush2.bf16.msra.mxu0 %v439
    %515 = vmatprep.subr.bf16.mxu0 %v438
    %516 = vmatpush2.bf16.msra.mxu0 %v437
    %517 = vmatprep.mubr.bf16.mxu0 %v324
    %518 = vmatmul.mubr.bf16.gmra.mxu0 %v323
    %v519 = vpop.f32.mrf.mxu0
    %v520 = vadd.f32 0.0, %v519
    %v521 = vpop.f32.mrf.mxu0
    %v522 = vadd.f32 0.0, %v521
    %v523 = vpop.f32.mrf.mxu0
    %v524 = vpop.f32.mrf.mxu0
    %525 = vdwg.mxu0
    %v526 = vadd.f32 %v267, %v520
    %v527 = vmul.f32 %v526, %v299
    %v528 = vtanh.pop %v527
    %v529 = vmul.f32 %v299, %v528
    %v530 = vadd.f32 %v529, %v300
    %531 = vrot.lane.b32.xlu0 %v530, 96
    %v532 = vpop.permute.xlu0 %531
    %533 = vrot.lane.b32.xlu0 %v530, 64
    %v534 = vpop.permute.xlu0 %533
    %535 = vrot.lane.b32.xlu0 %v530, 32
    %v536 = vpop.permute.xlu0 %535
    %v537 = vmul.f32 %v532, %v320
    %v538 = vmul.f32 %v530, %v534
    %v539 = vadd.f32 %v537, %v538
    %v540 = vtanh.pop %v539
    %v541 = vmul.f32 %v536, %v540
    %v542 = vadd.f32 %v306, %v522
    %v543 = vmul.f32 %v542, %v299
    %v544 = vtanh.pop %v543
    %v545 = vmul.f32 %v299, %v544
    %v546 = vadd.f32 %v545, %v300
    %547 = vrot.lane.b32.xlu0 %v546, 96
    %v548 = vpop.permute.xlu0 %547
    %549 = vrot.lane.b32.xlu0 %v546, 64
    %v550 = vpop.permute.xlu0 %549
    %551 = vrot.lane.b32.xlu0 %v546, 32
    %v552 = vpop.permute.xlu0 %551
    %v553 = vmul.f32 %v548, 0.0
    %v554 = vmul.f32 %v546, %v550
    %v555 = vadd.f32 %v553, %v554
    %v556 = vtanh.pop %v555
    %v557 = vmul.f32 %v552, %v556
    %v558 = vpack.c.bf16 %v541, %v541
    %v559 = vpack.c.bf16 %v557, %v557
    %560 = vmatprep.subr.bf16.mxu0 %v436
    %561 = vmatpush1.bf16.msra.mxu0 %v435
    %562 = vmatprep.subr.bf16.mxu0 %v434
    %563 = vmatpush1.bf16.msra.mxu0 %v433
    %564 = vmatprep.subr.bf16.mxu0 %v432
    %565 = vmatpush1.bf16.msra.mxu0 %v431
    %566 = vmatprep.subr.bf16.mxu0 %v430
    %567 = vmatpush1.bf16.msra.mxu0 %v429
    %568 = vmatprep.subr.bf16.mxu0 %v428
    %569 = vmatpush1.bf16.msra.mxu0 %v427
    %570 = vmatprep.subr.bf16.mxu0 %v426
    %571 = vmatpush1.bf16.msra.mxu0 %v425
    %572 = vmatprep.subr.bf16.mxu0 %v424
    %573 = vmatpush1.bf16.msra.mxu0 %v423
    %574 = vmatprep.subr.bf16.mxu0 %v422
    %575 = vmatpush1.bf16.msra.mxu0 %v421
    %576 = vmatprep.subr.bf16.mxu0 %v452
    %577 = vmatpush2.bf16.msra.mxu0 %v451
    %578 = vmatprep.subr.bf16.mxu0 %v450
    %579 = vmatpush2.bf16.msra.mxu0 %v449
    %580 = vmatprep.subr.bf16.mxu0 %v448
    %581 = vmatpush2.bf16.msra.mxu0 %v447
    %582 = vmatprep.subr.bf16.mxu0 %v446
    %583 = vmatpush2.bf16.msra.mxu0 %v445
    %584 = vmatprep.subr.bf16.mxu0 %v444
    %585 = vmatpush2.bf16.msra.mxu0 %v443
    %586 = vmatprep.subr.bf16.mxu0 %v442
    %587 = vmatpush2.bf16.msra.mxu0 %v441
    %588 = vmatprep.subr.bf16.mxu0 %v440
    %589 = vmatpush2.bf16.msra.mxu0 %v439
    %590 = vmatprep.subr.bf16.mxu0 %v438
    %591 = vmatpush2.bf16.msra.mxu0 %v437
    %592 = vmatprep.mubr.bf16.mxu0 %v559
    %593 = vmatmul.mubr.bf16.gmra.mxu0 %v558
    %v594 = vpop.f32.mrf.mxu0
    %v595 = vadd.f32 0.0, %v594
    %v596 = vpop.f32.mrf.mxu0
    %v597 = vadd.f32 0.0, %v596
    %v598 = vpop.f32.mrf.mxu0
    %v599 = vpop.f32.mrf.mxu0
    %600 = vdwg.mxu0
    %v601 = vadd.f32 %v272, %v595
    %v602 = vmul.f32 %v601, %v299
    %v603 = vtanh.pop %v602
    %v604 = vmul.f32 %v299, %v603
    %v605 = vadd.f32 %v604, %v300
    %606 = vrot.lane.b32.xlu0 %v605, 96
    %v607 = vpop.permute.xlu0 %606
    %608 = vrot.lane.b32.xlu0 %v605, 64
    %v609 = vpop.permute.xlu0 %608
    %610 = vrot.lane.b32.xlu0 %v605, 32
    %v611 = vpop.permute.xlu0 %610
    %v612 = vmul.f32 %v607, %v539
    %v613 = vmul.f32 %v605, %v609
    %v614 = vadd.f32 %v612, %v613
    %v615 = vtanh.pop %v614
    %v616 = vmul.f32 %v611, %v615
    %v617 = vadd.f32 %v306, %v597
    %v618 = vmul.f32 %v617, %v299
    %v619 = vtanh.pop %v618
    %v620 = vmul.f32 %v299, %v619
    %v621 = vadd.f32 %v620, %v300
    %622 = vrot.lane.b32.xlu0 %v621, 96
    %v623 = vpop.permute.xlu0 %622
    %624 = vrot.lane.b32.xlu0 %v621, 64
    %v625 = vpop.permute.xlu0 %624
    %626 = vrot.lane.b32.xlu0 %v621, 32
    %v627 = vpop.permute.xlu0 %626
    %v628 = vmul.f32 %v623, %v555
    %v629 = vmul.f32 %v621, %v625
    %v630 = vadd.f32 %v628, %v629
    %v631 = vtanh.pop %v630
    %v632 = vmul.f32 %v627, %v631
    %v633 = vpack.c.bf16 %v616, %v616
    %v634 = vpack.c.bf16 %v632, %v632
    %635 = vmatprep.subr.bf16.mxu0 %v436
    %636 = vmatpush1.bf16.msra.mxu0 %v435
    %637 = vmatprep.subr.bf16.mxu0 %v434
    %638 = vmatpush1.bf16.msra.mxu0 %v433
    %639 = vmatprep.subr.bf16.mxu0 %v432
    %640 = vmatpush1.bf16.msra.mxu0 %v431
    %641 = vmatprep.subr.bf16.mxu0 %v430
    %642 = vmatpush1.bf16.msra.mxu0 %v429
    %643 = vmatprep.subr.bf16.mxu0 %v428
    %644 = vmatpush1.bf16.msra.mxu0 %v427
    %645 = vmatprep.subr.bf16.mxu0 %v426
    %646 = vmatpush1.bf16.msra.mxu0 %v425
    %647 = vmatprep.subr.bf16.mxu0 %v424
    %648 = vmatpush1.bf16.msra.mxu0 %v423
    %649 = vmatprep.subr.bf16.mxu0 %v422
    %650 = vmatpush1.bf16.msra.mxu0 %v421
    %651 = vmatprep.subr.bf16.mxu0 %v452
    %652 = vmatpush2.bf16.msra.mxu0 %v451
    %653 = vmatprep.subr.bf16.mxu0 %v450
    %654 = vmatpush2.bf16.msra.mxu0 %v449
    %655 = vmatprep.subr.bf16.mxu0 %v448
    %656 = vmatpush2.bf16.msra.mxu0 %v447
    %657 = vmatprep.subr.bf16.mxu0 %v446
    %658 = vmatpush2.bf16.msra.mxu0 %v445
    %659 = vmatprep.subr.bf16.mxu0 %v444
    %660 = vmatpush2.bf16.msra.mxu0 %v443
    %661 = vmatprep.subr.bf16.mxu0 %v442
    %662 = vmatpush2.bf16.msra.mxu0 %v441
    %663 = vmatprep.subr.bf16.mxu0 %v440
    %664 = vmatpush2.bf16.msra.mxu0 %v439
    %665 = vmatprep.subr.bf16.mxu0 %v438
    %666 = vmatpush2.bf16.msra.mxu0 %v437
    %667 = vmatprep.mubr.bf16.mxu0 %v634
    %668 = vmatmul.mubr.bf16.gmra.mxu0 %v633
    %v669 = vpop.f32.mrf.mxu0
    %v670 = vadd.f32 0.0, %v669
    %v671 = vpop.f32.mrf.mxu0
    %v672 = vadd.f32 0.0, %v671
    %v673 = vpop.f32.mrf.mxu0
    %v674 = vpop.f32.mrf.mxu0
    %675 = vdwg.mxu0
    %v676 = vadd.f32 %v275, %v670
    %v677 = vmul.f32 %v676, %v299
    %v678 = vtanh.pop %v677
    %v679 = vmul.f32 %v299, %v678
    %v680 = vadd.f32 %v679, %v300
    %681 = vrot.lane.b32.xlu0 %v680, 96
    %v682 = vpop.permute.xlu0 %681
    %683 = vrot.lane.b32.xlu0 %v680, 64
    %v684 = vpop.permute.xlu0 %683
    %685 = vrot.lane.b32.xlu0 %v680, 32
    %v686 = vpop.permute.xlu0 %685
    %v687 = vmul.f32 %v682, %v614
    %v688 = vmul.f32 %v680, %v684
    %v689 = vadd.f32 %v687, %v688
    %v690 = vtanh.pop %v689
    %v691 = vmul.f32 %v686, %v690
    %v692 = vadd.f32 %v306, %v672
    %v693 = vmul.f32 %v692, %v299
    %v694 = vtanh.pop %v693
    %v695 = vmul.f32 %v299, %v694
    %v696 = vadd.f32 %v695, %v300
    %697 = vrot.lane.b32.xlu0 %v696, 96
    %v698 = vpop.permute.xlu0 %697
    %699 = vrot.lane.b32.xlu0 %v696, 64
    %v700 = vpop.permute.xlu0 %699
    %701 = vrot.lane.b32.xlu0 %v696, 32
    %v702 = vpop.permute.xlu0 %701
    %v703 = vmul.f32 %v698, %v630
    %v704 = vmul.f32 %v696, %v700
    %v705 = vadd.f32 %v703, %v704
    %v706 = vtanh.pop %v705
    %v707 = vmul.f32 %v702, %v706
    %v708 = vpack.c.bf16 %v691, %v691
    %v709 = vpack.c.bf16 %v707, %v707
    %710 = vmatprep.subr.bf16.mxu0 %v436
    %711 = vmatpush1.bf16.msra.mxu0 %v435
    %712 = vmatprep.subr.bf16.mxu0 %v434
    %713 = vmatpush1.bf16.msra.mxu0 %v433
    %714 = vmatprep.subr.bf16.mxu0 %v432
    %715 = vmatpush1.bf16.msra.mxu0 %v431
    %716 = vmatprep.subr.bf16.mxu0 %v430
    %717 = vmatpush1.bf16.msra.mxu0 %v429
    %718 = vmatprep.subr.bf16.mxu0 %v428
    %719 = vmatpush1.bf16.msra.mxu0 %v427
    %720 = vmatprep.subr.bf16.mxu0 %v426
    %721 = vmatpush1.bf16.msra.mxu0 %v425
    %722 = vmatprep.subr.bf16.mxu0 %v424
    %723 = vmatpush1.bf16.msra.mxu0 %v423
    %724 = vmatprep.subr.bf16.mxu0 %v422
    %725 = vmatpush1.bf16.msra.mxu0 %v421
    %726 = vmatprep.subr.bf16.mxu0 %v452
    %727 = vmatpush2.bf16.msra.mxu0 %v451
    %728 = vmatprep.subr.bf16.mxu0 %v450
    %729 = vmatpush2.bf16.msra.mxu0 %v449
    %730 = vmatprep.subr.bf16.mxu0 %v448
    %731 = vmatpush2.bf16.msra.mxu0 %v447
    %732 = vmatprep.subr.bf16.mxu0 %v446
    %733 = vmatpush2.bf16.msra.mxu0 %v445
    %734 = vmatprep.subr.bf16.mxu0 %v444
    %735 = vmatpush2.bf16.msra.mxu0 %v443
    %736 = vmatprep.subr.bf16.mxu0 %v442
    %737 = vmatpush2.bf16.msra.mxu0 %v441
    %738 = vmatprep.subr.bf16.mxu0 %v440
    %739 = vmatpush2.bf16.msra.mxu0 %v439
    %740 = vmatprep.subr.bf16.mxu0 %v438
    %741 = vmatpush2.bf16.msra.mxu0 %v437
    %742 = vmatprep.mubr.bf16.mxu0 %v709
    %743 = vmatmul.mubr.bf16.gmra.mxu0 %v708
    %v744 = vpop.f32.mrf.mxu0
    %v745 = vadd.f32 0.0, %v744
    %v746 = vpop.f32.mrf.mxu0
    %v747 = vadd.f32 0.0, %v746
    %v748 = vpop.f32.mrf.mxu0
    %v749 = vpop.f32.mrf.mxu0
    %750 = vdwg.mxu0
    %v751 = vadd.f32 %v280, %v745
    %v752 = vmul.f32 %v751, %v299
    %v753 = vtanh.pop %v752
    %v754 = vmul.f32 %v299, %v753
    %v755 = vadd.f32 %v754, %v300
    %756 = vrot.lane.b32.xlu0 %v755, 96
    %v757 = vpop.permute.xlu0 %756
    %758 = vrot.lane.b32.xlu0 %v755, 64
    %v759 = vpop.permute.xlu0 %758
    %760 = vrot.lane.b32.xlu0 %v755, 32
    %v761 = vpop.permute.xlu0 %760
    %v762 = vmul.f32 %v757, %v689
    %v763 = vmul.f32 %v755, %v759
    %v764 = vadd.f32 %v762, %v763
    %v765 = vtanh.pop %v764
    %v766 = vmul.f32 %v761, %v765
    %v767 = vadd.f32 %v306, %v747
    %v768 = vmul.f32 %v767, %v299
    %v769 = vtanh.pop %v768
    %v770 = vmul.f32 %v299, %v769
    %v771 = vadd.f32 %v770, %v300
    %772 = vrot.lane.b32.xlu0 %v771, 96
    %v773 = vpop.permute.xlu0 %772
    %774 = vrot.lane.b32.xlu0 %v771, 64
    %v775 = vpop.permute.xlu0 %774
    %776 = vrot.lane.b32.xlu0 %v771, 32
    %v777 = vpop.permute.xlu0 %776
    %v778 = vmul.f32 %v773, %v705
    %v779 = vmul.f32 %v771, %v775
    %v780 = vadd.f32 %v778, %v779
    %v781 = vtanh.pop %v780
    %v782 = vmul.f32 %v777, %v781
    %v783 = vpack.c.bf16 %v766, %v766
    %v784 = vpack.c.bf16 %v782, %v782
    %785 = vmatprep.subr.bf16.mxu0 %v436
    %786 = vmatpush1.bf16.msra.mxu0 %v435
    %787 = vmatprep.subr.bf16.mxu0 %v434
    %788 = vmatpush1.bf16.msra.mxu0 %v433
    %789 = vmatprep.subr.bf16.mxu0 %v432
    %790 = vmatpush1.bf16.msra.mxu0 %v431
    %791 = vmatprep.subr.bf16.mxu0 %v430
    %792 = vmatpush1.bf16.msra.mxu0 %v429
    %793 = vmatprep.subr.bf16.mxu0 %v428
    %794 = vmatpush1.bf16.msra.mxu0 %v427
    %795 = vmatprep.subr.bf16.mxu0 %v426
    %796 = vmatpush1.bf16.msra.mxu0 %v425
    %797 = vmatprep.subr.bf16.mxu0 %v424
    %798 = vmatpush1.bf16.msra.mxu0 %v423
    %799 = vmatprep.subr.bf16.mxu0 %v422
    %800 = vmatpush1.bf16.msra.mxu0 %v421
    %801 = vmatprep.subr.bf16.mxu0 %v452
    %802 = vmatpush2.bf16.msra.mxu0 %v451
    %803 = vmatprep.subr.bf16.mxu0 %v450
    %804 = vmatpush2.bf16.msra.mxu0 %v449
    %805 = vmatprep.subr.bf16.mxu0 %v448
    %806 = vmatpush2.bf16.msra.mxu0 %v447
    %807 = vmatprep.subr.bf16.mxu0 %v446
    %808 = vmatpush2.bf16.msra.mxu0 %v445
    %809 = vmatprep.subr.bf16.mxu0 %v444
    %810 = vmatpush2.bf16.msra.mxu0 %v443
    %811 = vmatprep.subr.bf16.mxu0 %v442
    %812 = vmatpush2.bf16.msra.mxu0 %v441
    %813 = vmatprep.subr.bf16.mxu0 %v440
    %814 = vmatpush2.bf16.msra.mxu0 %v439
    %815 = vmatprep.subr.bf16.mxu0 %v438
    %816 = vmatpush2.bf16.msra.mxu0 %v437
    %817 = vmatprep.mubr.bf16.mxu0 %v784
    %818 = vmatmul.mubr.bf16.gmra.mxu0 %v783
    %v819 = vpop.f32.mrf.mxu0
    %v820 = vadd.f32 0.0, %v819
    %v821 = vpop.f32.mrf.mxu0
    %v822 = vadd.f32 0.0, %v821
    %v823 = vpop.f32.mrf.mxu0
    %v824 = vpop.f32.mrf.mxu0
    %825 = vdwg.mxu0
    %v826 = vadd.f32 %v283, %v820
    %v827 = vmul.f32 %v826, %v299
    %v828 = vtanh.pop %v827
    %v829 = vmul.f32 %v299, %v828
    %v830 = vadd.f32 %v829, %v300
    %831 = vrot.lane.b32.xlu0 %v830, 96
    %v832 = vpop.permute.xlu0 %831
    %833 = vrot.lane.b32.xlu0 %v830, 64
    %v834 = vpop.permute.xlu0 %833
    %835 = vrot.lane.b32.xlu0 %v830, 32
    %v836 = vpop.permute.xlu0 %835
    %v837 = vmul.f32 %v832, %v764
    %v838 = vmul.f32 %v830, %v834
    %v839 = vadd.f32 %v837, %v838
    %v840 = vtanh.pop %v839
    %v841 = vmul.f32 %v836, %v840
    %v842 = vadd.f32 %v306, %v822
    %v843 = vmul.f32 %v842, %v299
    %v844 = vtanh.pop %v843
    %v845 = vmul.f32 %v299, %v844
    %v846 = vadd.f32 %v845, %v300
    %847 = vrot.lane.b32.xlu0 %v846, 96
    %v848 = vpop.permute.xlu0 %847
    %849 = vrot.lane.b32.xlu0 %v846, 64
    %v850 = vpop.permute.xlu0 %849
    %851 = vrot.lane.b32.xlu0 %v846, 32
    %v852 = vpop.permute.xlu0 %851
    %v853 = vmul.f32 %v848, %v780
    %v854 = vmul.f32 %v846, %v850
    %v855 = vadd.f32 %v853, %v854
    %v856 = vtanh.pop %v855
    %v857 = vmul.f32 %v852, %v856
    %v858 = vpack.c.bf16 %v841, %v841
    %v859 = vpack.c.bf16 %v857, %v857
    %860 = vmatprep.subr.bf16.mxu0 %v436
    %861 = vmatpush1.bf16.msra.mxu0 %v435
    %862 = vmatprep.subr.bf16.mxu0 %v434
    %863 = vmatpush1.bf16.msra.mxu0 %v433
    %864 = vmatprep.subr.bf16.mxu0 %v432
    %865 = vmatpush1.bf16.msra.mxu0 %v431
    %866 = vmatprep.subr.bf16.mxu0 %v430
    %867 = vmatpush1.bf16.msra.mxu0 %v429
    %868 = vmatprep.subr.bf16.mxu0 %v428
    %869 = vmatpush1.bf16.msra.mxu0 %v427
    %870 = vmatprep.subr.bf16.mxu0 %v426
    %871 = vmatpush1.bf16.msra.mxu0 %v425
    %872 = vmatprep.subr.bf16.mxu0 %v424
    %873 = vmatpush1.bf16.msra.mxu0 %v423
    %874 = vmatprep.subr.bf16.mxu0 %v422
    %875 = vmatpush1.bf16.msra.mxu0 %v421
    %876 = vmatprep.subr.bf16.mxu0 %v452
    %877 = vmatpush2.bf16.msra.mxu0 %v451
    %878 = vmatprep.subr.bf16.mxu0 %v450
    %879 = vmatpush2.bf16.msra.mxu0 %v449
    %880 = vmatprep.subr.bf16.mxu0 %v448
    %881 = vmatpush2.bf16.msra.mxu0 %v447
    %882 = vmatprep.subr.bf16.mxu0 %v446
    %883 = vmatpush2.bf16.msra.mxu0 %v445
    %884 = vmatprep.subr.bf16.mxu0 %v444
    %885 = vmatpush2.bf16.msra.mxu0 %v443
    %886 = vmatprep.subr.bf16.mxu0 %v442
    %887 = vmatpush2.bf16.msra.mxu0 %v441
    %888 = vmatprep.subr.bf16.mxu0 %v440
    %889 = vmatpush2.bf16.msra.mxu0 %v439
    %890 = vmatprep.subr.bf16.mxu0 %v438
    %891 = vmatpush2.bf16.msra.mxu0 %v437
    %892 = vmatprep.mubr.bf16.mxu0 %v859
    %893 = vmatmul.mubr.bf16.gmra.mxu0 %v858
    %v894 = vpop.f32.mrf.mxu0
    %v895 = vadd.f32 0.0, %v894
    %v896 = vpop.f32.mrf.mxu0
    %v897 = vadd.f32 0.0, %v896
    %v898 = vpop.f32.mrf.mxu0
    %v899 = vpop.f32.mrf.mxu0
    %900 = vdwg.mxu0
    %v901 = vadd.f32 %v288, %v895
    %v902 = vmul.f32 %v901, %v299
    %v903 = vtanh.pop %v902
    %v904 = vmul.f32 %v299, %v903
    %v905 = vadd.f32 %v904, %v300
    %906 = vrot.lane.b32.xlu0 %v905, 96
    %v907 = vpop.permute.xlu0 %906
    %908 = vrot.lane.b32.xlu0 %v905, 64
    %v909 = vpop.permute.xlu0 %908
    %910 = vrot.lane.b32.xlu0 %v905, 32
    %v911 = vpop.permute.xlu0 %910
    %v912 = vmul.f32 %v907, %v839
    %v913 = vmul.f32 %v905, %v909
    %v914 = vadd.f32 %v912, %v913
    %v915 = vtanh.pop %v914
    %v916 = vmul.f32 %v911, %v915
    %v917 = vadd.f32 %v306, %v897
    %v918 = vmul.f32 %v917, %v299
    %v919 = vtanh.pop %v918
    %v920 = vmul.f32 %v299, %v919
    %v921 = vadd.f32 %v920, %v300
    %922 = vrot.lane.b32.xlu0 %v921, 96
    %v923 = vpop.permute.xlu0 %922
    %924 = vrot.lane.b32.xlu0 %v921, 64
    %v925 = vpop.permute.xlu0 %924
    %926 = vrot.lane.b32.xlu0 %v921, 32
    %v927 = vpop.permute.xlu0 %926
    %v928 = vmul.f32 %v923, %v855
    %v929 = vmul.f32 %v921, %v925
    %v930 = vadd.f32 %v928, %v929
    %v931 = vtanh.pop %v930
    %v932 = vmul.f32 %v927, %v931
    %v933 = vpack.c.bf16 %v916, %v916
    %v934 = vpack.c.bf16 %v932, %v932
    %935 = vmatprep.subr.bf16.mxu0 %v436
    %936 = vmatpush1.bf16.msra.mxu0 %v435
    %937 = vmatprep.subr.bf16.mxu0 %v434
    %938 = vmatpush1.bf16.msra.mxu0 %v433
    %939 = vmatprep.subr.bf16.mxu0 %v432
    %940 = vmatpush1.bf16.msra.mxu0 %v431
    %941 = vmatprep.subr.bf16.mxu0 %v430
    %942 = vmatpush1.bf16.msra.mxu0 %v429
    %943 = vmatprep.subr.bf16.mxu0 %v428
    %944 = vmatpush1.bf16.msra.mxu0 %v427
    %945 = vmatprep.subr.bf16.mxu0 %v426
    %946 = vmatpush1.bf16.msra.mxu0 %v425
    %947 = vmatprep.subr.bf16.mxu0 %v424
    %948 = vmatpush1.bf16.msra.mxu0 %v423
    %949 = vmatprep.subr.bf16.mxu0 %v422
    %950 = vmatpush1.bf16.msra.mxu0 %v421
    %951 = vmatprep.subr.bf16.mxu0 %v452
    %952 = vmatpush2.bf16.msra.mxu0 %v451
    %953 = vmatprep.subr.bf16.mxu0 %v450
    %954 = vmatpush2.bf16.msra.mxu0 %v449
    %955 = vmatprep.subr.bf16.mxu0 %v448
    %956 = vmatpush2.bf16.msra.mxu0 %v447
    %957 = vmatprep.subr.bf16.mxu0 %v446
    %958 = vmatpush2.bf16.msra.mxu0 %v445
    %959 = vmatprep.subr.bf16.mxu0 %v444
    %960 = vmatpush2.bf16.msra.mxu0 %v443
    %961 = vmatprep.subr.bf16.mxu0 %v442
    %962 = vmatpush2.bf16.msra.mxu0 %v441
    %963 = vmatprep.subr.bf16.mxu0 %v440
    %964 = vmatpush2.bf16.msra.mxu0 %v439
    %965 = vmatprep.subr.bf16.mxu0 %v438
    %966 = vmatpush2.bf16.msra.mxu0 %v437
    %967 = vmatprep.mubr.bf16.mxu0 %v934
    %968 = vmatmul.mubr.bf16.gmra.mxu0 %v933
    %v969 = vpop.f32.mrf.mxu0
    %v970 = vadd.f32 0.0, %v969
    %v971 = vpop.f32.mrf.mxu0
    %v972 = vadd.f32 0.0, %v971
    %v973 = vpop.f32.mrf.mxu0
    %v974 = vpop.f32.mrf.mxu0
    %975 = vdwg.mxu0
    %v976 = vadd.f32 %v291, %v970
    %v977 = vmul.f32 %v976, %v299
    %v978 = vtanh.pop %v977
    %v979 = vmul.f32 %v299, %v978
    %v980 = vadd.f32 %v979, %v300
    %981 = vrot.lane.b32.xlu0 %v980, 96
    %v982 = vpop.permute.xlu0 %981
    %983 = vrot.lane.b32.xlu0 %v980, 64
    %v984 = vpop.permute.xlu0 %983
    %985 = vrot.lane.b32.xlu0 %v980, 32
    %v986 = vpop.permute.xlu0 %985
    %v987 = vmul.f32 %v982, %v914
    %v988 = vmul.f32 %v980, %v984
    %v989 = vadd.f32 %v987, %v988
    %v990 = vtanh.pop %v989
    %v991 = vmul.f32 %v986, %v990
    %v992 = vadd.f32 %v306, %v972
    %v993 = vmul.f32 %v992, %v299
    %v994 = vtanh.pop %v993
    %v995 = vmul.f32 %v299, %v994
    %v996 = vadd.f32 %v995, %v300
    %997 = vrot.lane.b32.xlu0 %v996, 96
    %v998 = vpop.permute.xlu0 %997
    %999 = vrot.lane.b32.xlu0 %v996, 64
    %v1000 = vpop.permute.xlu0 %999
    %1001 = vrot.lane.b32.xlu0 %v996, 32
    %v1002 = vpop.permute.xlu0 %1001
    %v1003 = vmul.f32 %v998, %v930
    %v1004 = vmul.f32 %v996, %v1000
    %v1005 = vadd.f32 %v1003, %v1004
    %v1006 = vtanh.pop %v1005
    %v1007 = vmul.f32 %v1002, %v1006
    %v1008 = vpack.c.bf16 %v991, %v991
    %v1009 = vpack.c.bf16 %v1007, %v1007
    %1010 = vmatprep.subr.bf16.mxu0 %v436
    %1011 = vmatpush1.bf16.msra.mxu0 %v435
    %1012 = vmatprep.subr.bf16.mxu0 %v434
    %1013 = vmatpush1.bf16.msra.mxu0 %v433
    %1014 = vmatprep.subr.bf16.mxu0 %v432
    %1015 = vmatpush1.bf16.msra.mxu0 %v431
    %1016 = vmatprep.subr.bf16.mxu0 %v430
    %1017 = vmatpush1.bf16.msra.mxu0 %v429
    %1018 = vmatprep.subr.bf16.mxu0 %v428
    %1019 = vmatpush1.bf16.msra.mxu0 %v427
    %1020 = vmatprep.subr.bf16.mxu0 %v426
    %1021 = vmatpush1.bf16.msra.mxu0 %v425
    %1022 = vmatprep.subr.bf16.mxu0 %v424
    %1023 = vmatpush1.bf16.msra.mxu0 %v423
    %1024 = vmatprep.subr.bf16.mxu0 %v422
    %1025 = vmatpush1.bf16.msra.mxu0 %v421
    %1026 = vmatprep.subr.bf16.mxu0 %v452
    %1027 = vmatpush2.bf16.msra.mxu0 %v451
    %1028 = vmatprep.subr.bf16.mxu0 %v450
    %1029 = vmatpush2.bf16.msra.mxu0 %v449
    %1030 = vmatprep.subr.bf16.mxu0 %v448
    %1031 = vmatpush2.bf16.msra.mxu0 %v447
    %1032 = vmatprep.subr.bf16.mxu0 %v446
    %1033 = vmatpush2.bf16.msra.mxu0 %v445
    %1034 = vmatprep.subr.bf16.mxu0 %v444
    %1035 = vmatpush2.bf16.msra.mxu0 %v443
    %1036 = vmatprep.subr.bf16.mxu0 %v442
    %1037 = vmatpush2.bf16.msra.mxu0 %v441
    %1038 = vmatprep.subr.bf16.mxu0 %v440
    %1039 = vmatpush2.bf16.msra.mxu0 %v439
    %1040 = vmatprep.subr.bf16.mxu0 %v438
    %1041 = vmatpush2.bf16.msra.mxu0 %v437
    %1042 = vmatprep.mubr.bf16.mxu0 %v1009
    %1043 = vmatmul.mubr.bf16.gmra.mxu0 %v1008
    %v1044 = vpop.f32.mrf.mxu0
    %v1045 = vpop.f32.mrf.mxu0
    %v1046 = vadd.f32 0.0, %v1045
    %v1047 = vpop.f32.mrf.mxu0
    %v1048 = vpop.f32.mrf.mxu0
    %1049 = vdwg.mxu0
    %v1050 = vadd.f32 %v306, %v1046
    %v1051 = vmul.f32 %v1050, %v299
    %v1052 = vtanh.pop %v1051
    %v1053 = vmul.f32 %v299, %v1052
    %v1054 = vadd.f32 %v1053, %v300
    %1055 = vrot.lane.b32.xlu0 %v1054, 96
    %v1056 = vpop.permute.xlu0 %1055
    %1057 = vrot.lane.b32.xlu0 %v1054, 64
    %v1058 = vpop.permute.xlu0 %1057
    %1059 = vrot.lane.b32.xlu0 %v1054, 32
    %v1060 = vpop.permute.xlu0 %1059
    %v1061 = vmul.f32 %v1056, %v1005
    %v1062 = vmul.f32 %v1054, %v1058
    %v1063 = vadd.f32 %v1061, %v1062
    %v1064 = vtanh.pop %v1063
    %v1065 = vmul.f32 %v1060, %v1064
    %v1066 = vpack.c.bf16 %v1065, %v1065
    %v1067 = vld [vmem:[#allocation4] sm:$0xf]
    %v1068 = vld [vmem:[#allocation4 + $0x4] sm:$0xf]
    %v1069 = vld [vmem:[#allocation4 + $0x8] sm:$0xf]
    %v1070 = vld [vmem:[#allocation4 + $0xc] sm:$0xf]
    %v1071 = vld [vmem:[#allocation4 + $0x10] sm:$0xf]
    %v1072 = vld [vmem:[#allocation4 + $0x14] sm:$0xf]
    %v1073 = vld [vmem:[#allocation4 + $0x18] sm:$0xf]
    %v1074 = vld [vmem:[#allocation4 + $0x1c] sm:$0xf]
    %v1075 = vld [vmem:[#allocation4 + $0x20] sm:$0xf]
    %v1076 = vld [vmem:[#allocation4 + $0x24] sm:$0xf]
    %v1077 = vld [vmem:[#allocation4 + $0x28] sm:$0xf]
    %v1078 = vld [vmem:[#allocation4 + $0x2c] sm:$0xf]
    %v1079 = vld [vmem:[#allocation4 + $0x30] sm:$0xf]
    %v1080 = vld [vmem:[#allocation4 + $0x34] sm:$0xf]
    %v1081 = vld [vmem:[#allocation4 + $0x38] sm:$0xf]
    %v1082 = vld [vmem:[#allocation4 + $0x3c] sm:$0xf]
    %v1083 = vld [vmem:[%s6] sm:$0x1]
    %v1085 = vlaneseq
    %v1086 = vshrl.u32 %v1085, 7
    %v1087 = vsub.s32 0, %v1086
    %v1088 = vrot.slane %v1083, %v1087
    %v1106 = vunpack.c.l.b16 %v1067
    %v1107 = vunpack.c.l.b16 %v1068
    %v1108 = vunpack.c.l.b16 %v1069
    %v1109 = vunpack.c.l.b16 %v1070
    %v1110 = vunpack.c.l.b16 %v1071
    %v1111 = vunpack.c.l.b16 %v1072
    %v1112 = vunpack.c.l.b16 %v1073
    %v1113 = vunpack.c.l.b16 %v1074
    %v1114 = vunpack.c.l.b16 %v1075
    %v1115 = vunpack.c.l.b16 %v1076
    %v1116 = vunpack.c.l.b16 %v1077
    %v1117 = vunpack.c.l.b16 %v1078
    %v1118 = vunpack.c.l.b16 %v1079
    %v1119 = vunpack.c.l.b16 %v1080
    %v1120 = vunpack.c.l.b16 %v1081
    %v1121 = vunpack.c.l.b16 %v1082
    %v1122 = vpack.c.b16 %v1107, %v1106
    %v1123 = vpack.c.b16 %v1109, %v1108
    %v1124 = vpack.c.b16 %v1111, %v1110
    %v1125 = vpack.c.b16 %v1113, %v1112
    %v1126 = vpack.c.b16 %v1115, %v1114
    %v1127 = vpack.c.b16 %v1117, %v1116
    %v1128 = vpack.c.b16 %v1119, %v1118
    %v1129 = vpack.c.b16 %v1121, %v1120
    %1138 = vmatprep.subr.bf16.mxu0 0
    %1139 = vmatpush1.bf16.msra.mxu0 %v1129
    %1140 = vmatprep.subr.bf16.mxu0 0
    %1141 = vmatpush1.bf16.msra.mxu0 %v1128
    %1142 = vmatprep.subr.bf16.mxu0 0
    %1143 = vmatpush1.bf16.msra.mxu0 %v1127
    %1144 = vmatprep.subr.bf16.mxu0 0
    %1145 = vmatpush1.bf16.msra.mxu0 %v1126
    %1146 = vmatprep.subr.bf16.mxu0 0
    %1147 = vmatpush1.bf16.msra.mxu0 %v1125
    %1148 = vmatprep.subr.bf16.mxu0 0
    %1149 = vmatpush1.bf16.msra.mxu0 %v1124
    %1150 = vmatprep.subr.bf16.mxu0 0
    %1151 = vmatpush1.bf16.msra.mxu0 %v1123
    %1152 = vmatprep.subr.bf16.mxu0 0
    %1153 = vmatpush1.bf16.msra.mxu0 %v1122
    %1154 = vmatprep.subr.bf16.mxu0 0
    %1155 = vmatpush2.bf16.msra.mxu0 0
    %1156 = vmatprep.subr.bf16.mxu0 0
    %1157 = vmatpush2.bf16.msra.mxu0 0
    %1158 = vmatprep.subr.bf16.mxu0 0
    %1159 = vmatpush2.bf16.msra.mxu0 0
    %1160 = vmatprep.subr.bf16.mxu0 0
    %1161 = vmatpush2.bf16.msra.mxu0 0
    %1162 = vmatprep.subr.bf16.mxu0 0
    %1163 = vmatpush2.bf16.msra.mxu0 0
    %1164 = vmatprep.subr.bf16.mxu0 0
    %1165 = vmatpush2.bf16.msra.mxu0 0
    %1166 = vmatprep.subr.bf16.mxu0 0
    %1167 = vmatpush2.bf16.msra.mxu0 0
    %1168 = vmatprep.subr.bf16.mxu0 0
    %1169 = vmatpush2.bf16.msra.mxu0 0
    %1170 = vmatprep.mubr.bf16.mxu0 0
    %1171 = vmatmul.mubr.bf16.gmra.mxu0 %v1066
    %v1172 = vpop.f32.mrf.mxu0
    %v1173 = vadd.f32 %v1088, %v1172
    %v1174 = vpop.f32.mrf.mxu0
    %v1175 = vpop.f32.mrf.mxu0
    %v1176 = vpop.f32.mrf.mxu0
    %1177 = vdwg.mxu0
    %v1178 = vtanh.pop %v1173
    %v1179 = vpack.c.bf16 %v1178, %v1178
    %v1180 = vld [vmem:[#allocation6] sm:$0xf]
    %v1181 = vld [vmem:[#allocation6 + $0x4] sm:$0xf]
    %v1182 = vld [vmem:[#allocation6 + $0x8] sm:$0xf]
    %v1183 = vld [vmem:[#allocation6 + $0xc] sm:$0xf]
    %v1184 = vld [vmem:[#allocation6 + $0x10] sm:$0xf]
    %v1185 = vld [vmem:[#allocation6 + $0x14] sm:$0xf]
    %v1186 = vld [vmem:[#allocation6 + $0x18] sm:$0xf]
    %v1187 = vld [vmem:[#allocation6 + $0x1c] sm:$0xf]
    %v1188 = vld [vmem:[#allocation6 + $0x20] sm:$0xf]
    %v1189 = vld [vmem:[#allocation6 + $0x24] sm:$0xf]
    %v1190 = vld [vmem:[#allocation6 + $0x28] sm:$0xf]
    %v1191 = vld [vmem:[#allocation6 + $0x2c] sm:$0xf]
    %v1192 = vld [vmem:[#allocation6 + $0x30] sm:$0xf]
    %v1193 = vld [vmem:[#allocation6 + $0x34] sm:$0xf]
    %v1194 = vld [vmem:[#allocation6 + $0x38] sm:$0xf]
    %v1195 = vld [vmem:[#allocation6 + $0x3c] sm:$0xf]
    %v1196 = vld [vmem:[%s8] sm:$0x1]
    %v1198 = vlaneseq
    %v1199 = vshrl.u32 %v1198, 7
    %v1200 = vsub.s32 0, %v1199
    %v1201 = vrot.slane %v1196, %v1200
    %v1219 = vunpack.c.l.b16 %v1180
    %v1220 = vunpack.c.l.b16 %v1181
    %v1221 = vunpack.c.l.b16 %v1182
    %v1222 = vunpack.c.l.b16 %v1183
    %v1223 = vunpack.c.l.b16 %v1184
    %v1224 = vunpack.c.l.b16 %v1185
    %v1225 = vunpack.c.l.b16 %v1186
    %v1226 = vunpack.c.l.b16 %v1187
    %v1227 = vunpack.c.l.b16 %v1188
    %v1228 = vunpack.c.l.b16 %v1189
    %v1229 = vunpack.c.l.b16 %v1190
    %v1230 = vunpack.c.l.b16 %v1191
    %v1231 = vunpack.c.l.b16 %v1192
    %v1232 = vunpack.c.l.b16 %v1193
    %v1233 = vunpack.c.l.b16 %v1194
    %v1234 = vunpack.c.l.b16 %v1195
    %v1235 = vpack.c.b16 %v1220, %v1219
    %v1236 = vpack.c.b16 %v1222, %v1221
    %v1237 = vpack.c.b16 %v1224, %v1223
    %v1238 = vpack.c.b16 %v1226, %v1225
    %v1239 = vpack.c.b16 %v1228, %v1227
    %v1240 = vpack.c.b16 %v1230, %v1229
    %v1241 = vpack.c.b16 %v1232, %v1231
    %v1242 = vpack.c.b16 %v1234, %v1233
    %1251 = vmatprep.subr.bf16.mxu0 0
    %1252 = vmatpush1.bf16.msra.mxu0 %v1242
    %1253 = vmatprep.subr.bf16.mxu0 0
    %1254 = vmatpush1.bf16.msra.mxu0 %v1241
    %1255 = vmatprep.subr.bf16.mxu0 0
    %1256 = vmatpush1.bf16.msra.mxu0 %v1240
    %1257 = vmatprep.subr.bf16.mxu0 0
    %1258 = vmatpush1.bf16.msra.mxu0 %v1239
    %1259 = vmatprep.subr.bf16.mxu0 0
    %1260 = vmatpush1.bf16.msra.mxu0 %v1238
    %1261 = vmatprep.subr.bf16.mxu0 0
    %1262 = vmatpush1.bf16.msra.mxu0 %v1237
    %1263 = vmatprep.subr.bf16.mxu0 0
    %1264 = vmatpush1.bf16.msra.mxu0 %v1236
    %1265 = vmatprep.subr.bf16.mxu0 0
    %1266 = vmatpush1.bf16.msra.mxu0 %v1235
    %1267 = vmatprep.subr.bf16.mxu0 0
    %1268 = vmatpush2.bf16.msra.mxu0 0
    %1269 = vmatprep.subr.bf16.mxu0 0
    %1270 = vmatpush2.bf16.msra.mxu0 0
    %1271 = vmatprep.subr.bf16.mxu0 0
    %1272 = vmatpush2.bf16.msra.mxu0 0
    %1273 = vmatprep.subr.bf16.mxu0 0
    %1274 = vmatpush2.bf16.msra.mxu0 0
    %1275 = vmatprep.subr.bf16.mxu0 0
    %1276 = vmatpush2.bf16.msra.mxu0 0
    %1277 = vmatprep.subr.bf16.mxu0 0
    %1278 = vmatpush2.bf16.msra.mxu0 0
    %1279 = vmatprep.subr.bf16.mxu0 0
    %1280 = vmatpush2.bf16.msra.mxu0 0
    %1281 = vmatprep.subr.bf16.mxu0 0
    %1282 = vmatpush2.bf16.msra.mxu0 0
    %1283 = vmatprep.mubr.bf16.mxu0 0
    %1284 = vmatmul.mubr.bf16.gmra.mxu0 %v1179
    %v1285 = vpop.f32.mrf.mxu0
    %v1286 = vadd.f32 %v1201, %v1285
    %v1287 = vpop.f32.mrf.mxu0
    %v1288 = vpop.f32.mrf.mxu0
    %v1289 = vpop.f32.mrf.mxu0
    %1290 = vdwg.mxu0
    %v1291 = vtanh.pop %v1286
    %v1292 = vpack.c.bf16 %v1291, %v1291
    %v1293 = vld [vmem:[#allocation7] sm:$0xf]
    %v1294 = vld [vmem:[#allocation7 + $0x4] sm:$0xf]
    %v1295 = vld [vmem:[#allocation7 + $0x8] sm:$0xf]
    %v1296 = vld [vmem:[#allocation7 + $0xc] sm:$0xf]
    %v1297 = vld [vmem:[#allocation7 + $0x10] sm:$0xf]
    %v1298 = vld [vmem:[#allocation7 + $0x14] sm:$0xf]
    %v1299 = vld [vmem:[#allocation7 + $0x18] sm:$0xf]
    %v1300 = vld [vmem:[#allocation7 + $0x1c] sm:$0xf]
    %v1301 = vld [vmem:[#allocation7 + $0x20] sm:$0xf]
    %v1302 = vld [vmem:[#allocation7 + $0x24] sm:$0xf]
    %v1303 = vld [vmem:[#allocation7 + $0x28] sm:$0xf]
    %v1304 = vld [vmem:[#allocation7 + $0x2c] sm:$0xf]
    %v1305 = vld [vmem:[#allocation7 + $0x30] sm:$0xf]
    %v1306 = vld [vmem:[#allocation7 + $0x34] sm:$0xf]
    %v1307 = vld [vmem:[#allocation7 + $0x38] sm:$0xf]
    %v1308 = vld [vmem:[#allocation7 + $0x3c] sm:$0xf]
    %v1309 = vld [vmem:[%s10] sm:$0x1]
    %v1311 = vlaneseq
    %v1312 = vshrl.u32 %v1311, 7
    %v1313 = vsub.s32 0, %v1312
    %v1314 = vrot.slane %v1309, %v1313
    %v1332 = vunpack.c.l.b16 %v1293
    %v1333 = vunpack.c.l.b16 %v1294
    %v1334 = vunpack.c.l.b16 %v1295
    %v1335 = vunpack.c.l.b16 %v1296
    %v1336 = vunpack.c.l.b16 %v1297
    %v1337 = vunpack.c.l.b16 %v1298
    %v1338 = vunpack.c.l.b16 %v1299
    %v1339 = vunpack.c.l.b16 %v1300
    %v1340 = vunpack.c.l.b16 %v1301
    %v1341 = vunpack.c.l.b16 %v1302
    %v1342 = vunpack.c.l.b16 %v1303
    %v1343 = vunpack.c.l.b16 %v1304
    %v1344 = vunpack.c.l.b16 %v1305
    %v1345 = vunpack.c.l.b16 %v1306
    %v1346 = vunpack.c.l.b16 %v1307
    %v1347 = vunpack.c.l.b16 %v1308
    %v1348 = vpack.c.b16 %v1333, %v1332
    %v1349 = vpack.c.b16 %v1335, %v1334
    %v1350 = vpack.c.b16 %v1337, %v1336
    %v1351 = vpack.c.b16 %v1339, %v1338
    %v1352 = vpack.c.b16 %v1341, %v1340
    %v1353 = vpack.c.b16 %v1343, %v1342
    %v1354 = vpack.c.b16 %v1345, %v1344
    %v1355 = vpack.c.b16 %v1347, %v1346
    %1364 = vmatprep.subr.bf16.mxu0 0
    %1365 = vmatpush1.bf16.msra.mxu0 %v1355
    %1366 = vmatprep.subr.bf16.mxu0 0
    %1367 = vmatpush1.bf16.msra.mxu0 %v1354
    %1368 = vmatprep.subr.bf16.mxu0 0
    %1369 = vmatpush1.bf16.msra.mxu0 %v1353
    %1370 = vmatprep.subr.bf16.mxu0 0
    %1371 = vmatpush1.bf16.msra.mxu0 %v1352
    %1372 = vmatprep.subr.bf16.mxu0 0
    %1373 = vmatpush1.bf16.msra.mxu0 %v1351
    %1374 = vmatprep.subr.bf16.mxu0 0
    %1375 = vmatpush1.bf16.msra.mxu0 %v1350
    %1376 = vmatprep.subr.bf16.mxu0 0
    %1377 = vmatpush1.bf16.msra.mxu0 %v1349
    %1378 = vmatprep.subr.bf16.mxu0 0
    %1379 = vmatpush1.bf16.msra.mxu0 %v1348
    %1380 = vmatprep.subr.bf16.mxu0 0
    %1381 = vmatpush2.bf16.msra.mxu0 0
    %1382 = vmatprep.subr.bf16.mxu0 0
    %1383 = vmatpush2.bf16.msra.mxu0 0
    %1384 = vmatprep.subr.bf16.mxu0 0
    %1385 = vmatpush2.bf16.msra.mxu0 0
    %1386 = vmatprep.subr.bf16.mxu0 0
    %1387 = vmatpush2.bf16.msra.mxu0 0
    %1388 = vmatprep.subr.bf16.mxu0 0
    %1389 = vmatpush2.bf16.msra.mxu0 0
    %1390 = vmatprep.subr.bf16.mxu0 0
    %1391 = vmatpush2.bf16.msra.mxu0 0
    %1392 = vmatprep.subr.bf16.mxu0 0
    %1393 = vmatpush2.bf16.msra.mxu0 0
    %1394 = vmatprep.subr.bf16.mxu0 0
    %1395 = vmatpush2.bf16.msra.mxu0 0
    %1396 = vmatprep.mubr.bf16.mxu0 0
    %1397 = vmatmul.mubr.bf16.gmra.mxu0 %v1292
    %v1398 = vpop.f32.mrf.mxu0
    %v1399 = vadd.f32 %v1314, %v1398
    %v1400 = vpop.f32.mrf.mxu0
    %v1401 = vpop.f32.mrf.mxu0
    %v1402 = vpop.f32.mrf.mxu0
    %1403 = vdwg.mxu0
    %1404 = vst [vmem:[%s11] sm:$0xff] %v1399
    // Predicated region
    $region62: #{lstm_model_forward.1} parent=1 // pred_check
      _
    $region63: #{lstm_model_forward.1} parent=1 // pred_check_branch
      %1406 = sbr.rel (0) target = $region65
    $region64: #{lstm_model_forward.1} parent=1 // pred_region
      _
    $region65: #{lstm_model_forward.1} parent=1 // pred_fallthru
      _
    // Predicated region
    $region66: #{lstm_model_forward.1} parent=1 // pred_check
      _
    $region67: #{lstm_model_forward.1} parent=1 // pred_check_branch
      %1408 = sbr.rel (0) target = $region69
    $region68: #{lstm_model_forward.1} parent=1 // pred_region
      _
    $region69: #{lstm_model_forward.1} parent=1 // pred_fallthru
      _
    %1409 = vsyncpa [#allocation3], 1
    %1410 = vsyncpa [#allocation5], 1
    %1411 = vsyncpa [#allocation8], 1

</llo_original>
